<compile_context>
chip_gen: v7x
topology: tpu7x:2x2x1
jax: 0.10.0
libtpu: 0.0.40
codegen_flags: <defaults>
</compile_context>

<pallas_src>
import math

import jax
import jax.numpy as jnp
from jax.experimental import pallas as pl
from jax.experimental.pallas import tpu as pltpu  # noqa: F401  (TPU backend assumed)

# Small, module-consistent shapes.
N = 2            # batch
SEQ = 8          # value_len == key_len == query_len
EMBED = 32       # embed_size
HEADS = 4
HEAD_DIM = EMBED // HEADS
B = N * HEADS    # fused (batch, head) axis
assert HEAD_DIM * HEADS == EMBED


# ---------------------------------------------------------------------------
# Fused kernel: folded Q projection, masked softmax attention over RAW K/V and
# the folded (Wv^T Wo_h) output projection, all in one invocation.
#   q_ref    : (B, SEQ, D)    head-major query
#   k_ref    : (B, SEQ, D)    head-major keys   (no projection needed)
#   v_ref    : (B, SEQ, D)    head-major values (no projection needed)
#   wqk_ref  : (B, D, D)      folded (Wq^T Wk) * 1/sqrt(embed), tiled over B
#   wvo_ref  : (B, D, EMBED)  folded Wv^T @ Wo[:, h*D:(h+1)*D]^T per head
#   mask_ref : (B, SEQ, SEQ)  additive f32 mask (0 keep / -1e20 masked)
#   bo_ref   : (1, 1, EMBED)  fc_out bias
#   o_ref    : (N, SEQ, EMBED) final output
# ---------------------------------------------------------------------------
def fused_attention_kernel(q_ref, k_ref, v_ref, wqk_ref, wvo_ref, mask_ref,
                           bo_ref, o_ref):
    # Folded Q projection (scale already folded in); K is used raw.
    qp = jnp.einsum("bqd,bde->bqe", q_ref[...], wqk_ref[...],
                    preferred_element_type=jnp.float32)
    energy = jnp.einsum("bqd,bkd->bqk", qp, k_ref[...],
                        preferred_element_type=jnp.float32)
    energy = energy + mask_ref[...]

    # Numerically stable softmax along keys; reciprocal on the EUP.
    m = jnp.max(energy, axis=-1, keepdims=True)
    p = jnp.exp(energy - m)
    denom = jnp.sum(p, axis=-1, keepdims=True)
    attn = p * pl.reciprocal(denom, approx=True)

    # Attention over raw values, then the folded (V-proj + fc_out) matmul:
    # per-head partial (SEQ, EMBED) outputs whose sum over heads equals
    # concat(heads) @ Wo^T of the original module.
    ctx = jnp.einsum("bqk,bkd->bqd", attn, v_ref[...],
                     preferred_element_type=jnp.float32)
    z = jnp.einsum("bqd,bde->bqe", ctx, wvo_ref[...],
                   preferred_element_type=jnp.float32)     # (B, SEQ, EMBED)

    bias = bo_ref[0]                                        # (1, EMBED)
    for n in range(N):                                      # N=2, unrolled
        blk = z[n * HEADS:(n + 1) * HEADS].sum(axis=0)      # (SEQ, EMBED)
        o_ref[n] = (blk + bias).astype(o_ref.dtype)


def self_attention_pallas(values, keys, query, mask, params):
    """values/keys/query: (N, SEQ, EMBED) f32; mask: (N, 1, SEQ, SEQ) int32."""
    wv, wk, wq, wo, bo = (params["wv"], params["wk"], params["wq"],
                          params["wo"], params["bo"])
    scale = 1.0 / math.sqrt(EMBED)

    def to_heads(x):  # (N, L, E) -> (N*H, L, D), head-major
        return (x.reshape(N, SEQ, HEADS, HEAD_DIM)
                 .transpose(0, 2, 1, 3)
                 .reshape(B, SEQ, HEAD_DIM))

    q_h = to_heads(query)
    k_h = to_heads(keys)
    v_h = to_heads(values)

    # Fold Q/K projections + softmax scale into a single (D, D) weight.
    wqk = (wq.T @ wk) * scale
    wqk_b = jnp.broadcast_to(wqk[None], (B, HEAD_DIM, HEAD_DIM))

    # Fold the V projection into the per-head slice of Wo^T:
    #   wvo_r[h] = Wv^T @ Wo[:, h*D:(h+1)*D]^T   -> (D, EMBED)
    wo_r = wo.T.reshape(HEADS, HEAD_DIM, EMBED)
    wvo_r = jnp.einsum("df,hfe->hde", wv.T, wo_r)          # (H, D, EMBED)
    wvo_b = jnp.tile(wvo_r, (N, 1, 1))                     # (B, D, EMBED)

    # Additive float mask (0 keep / -1e20 masked), broadcast over heads.
    add_mask = jnp.where(mask == 0, jnp.float32(-1e20), jnp.float32(0.0))
    add_mask = jnp.broadcast_to(add_mask, (N, HEADS, SEQ, SEQ)).reshape(B, SEQ, SEQ)

    bo3 = bo.reshape(1, 1, EMBED)

    return pl.pallas_call(
        fused_attention_kernel,
        out_shape=jax.ShapeDtypeStruct((N, SEQ, EMBED), jnp.float32),
    )(q_h, k_h, v_h, wqk_b, wvo_b, add_mask, bo3)


def self_attention_reference(values, keys, query, mask, params):
    """Pure-JAX reference mirroring the PyTorch forward exactly."""
    wv, wk, wq, wo, bo = (params["wv"], params["wk"], params["wq"],
                          params["wo"], params["bo"])
    vh = values.reshape(N, SEQ, HEADS, HEAD_DIM) @ wv.T
    kh = keys.reshape(N, SEQ, HEADS, HEAD_DIM) @ wk.T
    qh = query.reshape(N, SEQ, HEADS, HEAD_DIM) @ wq.T
    energy = jnp.einsum("nqhd,nkhd->nhqk", qh, kh)
    energy = jnp.where(mask == 0, jnp.float32(-1e20), energy)  # (N,1,S,S) bcast
    attn = jax.nn.softmax(energy / math.sqrt(EMBED), axis=3)
    out = jnp.einsum("nhql,nlhd->nqhd", attn, vh).reshape(N, SEQ, EMBED)
    return out @ wo.T + bo[0]


def init_params(key):
    """Deterministic init matching nn.Linear default (U(-1/sqrt(fan_in), +))."""
    ks = jax.random.split(key, 5)
    bd = 1.0 / math.sqrt(HEAD_DIM)
    be = 1.0 / math.sqrt(EMBED)
    return {
        "wv": jax.random.uniform(ks[0], (HEAD_DIM, HEAD_DIM), jnp.float32, -bd, bd),
        "wk": jax.random.uniform(ks[1], (HEAD_DIM, HEAD_DIM), jnp.float32, -bd, bd),
        "wq": jax.random.uniform(ks[2], (HEAD_DIM, HEAD_DIM), jnp.float32, -bd, bd),
        "wo": jax.random.uniform(ks[3], (EMBED, EMBED), jnp.float32, -be, be),
        "bo": jax.random.uniform(ks[4], (1, EMBED), jnp.float32, -be, be),
    }


if __name__ == "__main__":
    key = jax.random.PRNGKey(0)
    k_in, k_par = jax.random.split(key)
    kv_, kk_, kq_ = jax.random.split(k_in, 3)

    values = jax.random.normal(kv_, (N, SEQ, EMBED), jnp.float32)
    keys = jax.random.normal(kk_, (N, SEQ, EMBED), jnp.float32)
    query = jax.random.normal(kq_, (N, SEQ, EMBED), jnp.float32)
    # Causal mask (0 => masked) in the canonical (N, 1, Lq, Lk) shape,
    # broadcast over heads as in the PyTorch module.
    mask = jnp.broadcast_to(
        jnp.tril(jnp.ones((SEQ, SEQ), jnp.int32)), (N, 1, SEQ, SEQ))

    params = init_params(k_par)

    out = self_attention_pallas(values, keys, query, mask, params)
    out = jax.block_until_ready(out)

    ref = self_attention_reference(values, keys, query, mask, params)
    assert out.shape == (N, SEQ, EMBED)
    max_err = float(jnp.max(jnp.abs(out - ref)))
    assert jnp.allclose(out, ref, atol=2e-3, rtol=2e-3), f"max abs err {max_err}"

    print("KERNEL_OK")
</pallas_src>

<mosaic_0001>
module attributes {stable_mosaic.version = 11 : i64} {
  func.func @fused_attention_kernel(%arg0: memref<8x8x8xf32, #tpu.memory_space<vmem>>, %arg1: memref<8x8x8xf32, #tpu.memory_space<vmem>>, %arg2: memref<8x8x8xf32, #tpu.memory_space<vmem>>, %arg3: memref<8x8x8xf32, #tpu.memory_space<vmem>>, %arg4: memref<8x8x32xf32, #tpu.memory_space<vmem>>, %arg5: memref<8x8x8xf32, #tpu.memory_space<vmem>>, %arg6: memref<1x1x32xf32, #tpu.memory_space<vmem>>, %arg7: memref<2x8x32xf32, #tpu.memory_space<vmem>>) attributes {dimension_semantics = [], scalar_prefetch = 0 : i64, scratch_operands = 0 : i64, tpu.core_type = #tpu.core_type<tc>} {
    %c0 = arith.constant 0 : index
    %c0_0 = arith.constant 0 : index
    %c0_1 = arith.constant 0 : index
    %0 = vector.load %arg0[%c0, %c0_0, %c0_1] : memref<8x8x8xf32, #tpu.memory_space<vmem>>, vector<8x8x8xf32>
    %c0_2 = arith.constant 0 : index
    %c0_3 = arith.constant 0 : index
    %c0_4 = arith.constant 0 : index
    %1 = vector.load %arg3[%c0_2, %c0_3, %c0_4] : memref<8x8x8xf32, #tpu.memory_space<vmem>>, vector<8x8x8xf32>
    "tpu.trace_start"() <{level = 10 : i32, message = "bqd,bde->bqe"}> : () -> ()
    %cst = arith.constant dense<0.000000e+00> : vector<8x8x8xf32>
    %2 = tpu.matmul %0, %1, %cst {dimension_numbers = #tpu.dot_dimension_numbers<[2], [1], [1], [2], [0, 0, 0, 1, 1, 2], [0], [0]>} : vector<8x8x8xf32>, vector<8x8x8xf32>, vector<8x8x8xf32> -> vector<8x8x8xf32>
    "tpu.trace_stop"() : () -> ()
    %c0_5 = arith.constant 0 : index
    %c0_6 = arith.constant 0 : index
    %c0_7 = arith.constant 0 : index
    %3 = vector.load %arg1[%c0_5, %c0_6, %c0_7] : memref<8x8x8xf32, #tpu.memory_space<vmem>>, vector<8x8x8xf32>
    "tpu.trace_start"() <{level = 10 : i32, message = "bqd,bkd->bqk"}> : () -> ()
    %cst_8 = arith.constant dense<0.000000e+00> : vector<8x8x8xf32>
    %4 = tpu.matmul %2, %3, %cst_8 {dimension_numbers = #tpu.dot_dimension_numbers<[2], [2], [1], [1], [0, 0, 0, 1, 1, 1], [0], [0]>} : vector<8x8x8xf32>, vector<8x8x8xf32>, vector<8x8x8xf32> -> vector<8x8x8xf32>
    "tpu.trace_stop"() : () -> ()
    %c0_9 = arith.constant 0 : index
    %c0_10 = arith.constant 0 : index
    %c0_11 = arith.constant 0 : index
    %5 = vector.load %arg5[%c0_9, %c0_10, %c0_11] : memref<8x8x8xf32, #tpu.memory_space<vmem>>, vector<8x8x8xf32>
    %6 = arith.addf %4, %5 : vector<8x8x8xf32>
    %cst_12 = arith.constant dense<0xFF800000> : vector<8x8xf32>
    %7 = vector.multi_reduction <maximumf>, %6, %cst_12 [2] : vector<8x8x8xf32> to vector<8x8xf32>
    %8 = vector.shape_cast %7 : vector<8x8xf32> to vector<8x8x1xf32>
    %9 = vector.broadcast %8 : vector<8x8x1xf32> to vector<8x8x8xf32>
    %10 = arith.subf %6, %9 : vector<8x8x8xf32>
    %11 = math.exp %10 : vector<8x8x8xf32>
    %cst_13 = arith.constant dense<0.000000e+00> : vector<8x8xf32>
    %12 = vector.multi_reduction <add>, %11, %cst_13 [2] : vector<8x8x8xf32> to vector<8x8xf32>
    %13 = vector.shape_cast %12 : vector<8x8xf32> to vector<8x8x1xf32>
    %14 = tpu.reciprocal %13 {approx = true} : vector<8x8x1xf32> -> vector<8x8x1xf32>
    %15 = vector.broadcast %14 : vector<8x8x1xf32> to vector<8x8x8xf32>
    %16 = arith.mulf %11, %15 : vector<8x8x8xf32>
    %c0_14 = arith.constant 0 : index
    %c0_15 = arith.constant 0 : index
    %c0_16 = arith.constant 0 : index
    %17 = vector.load %arg2[%c0_14, %c0_15, %c0_16] : memref<8x8x8xf32, #tpu.memory_space<vmem>>, vector<8x8x8xf32>
    "tpu.trace_start"() <{level = 10 : i32, message = "bqk,bkd->bqd"}> : () -> ()
    %cst_17 = arith.constant dense<0.000000e+00> : vector<8x8x8xf32>
    %18 = tpu.matmul %16, %17, %cst_17 {dimension_numbers = #tpu.dot_dimension_numbers<[2], [1], [1], [2], [0, 0, 0, 1, 1, 2], [0], [0]>} : vector<8x8x8xf32>, vector<8x8x8xf32>, vector<8x8x8xf32> -> vector<8x8x8xf32>
    "tpu.trace_stop"() : () -> ()
    %c0_18 = arith.constant 0 : index
    %c0_19 = arith.constant 0 : index
    %c0_20 = arith.constant 0 : index
    %19 = vector.load %arg4[%c0_18, %c0_19, %c0_20] : memref<8x8x32xf32, #tpu.memory_space<vmem>>, vector<8x8x32xf32>
    "tpu.trace_start"() <{level = 10 : i32, message = "bqd,bde->bqe"}> : () -> ()
    %cst_21 = arith.constant dense<0.000000e+00> : vector<8x8x32xf32>
    %20 = tpu.matmul %18, %19, %cst_21 {dimension_numbers = #tpu.dot_dimension_numbers<[2], [1], [1], [2], [0, 0, 0, 1, 1, 2], [0], [0]>} : vector<8x8x8xf32>, vector<8x8x32xf32>, vector<8x8x32xf32> -> vector<8x8x32xf32>
    "tpu.trace_stop"() : () -> ()
    %c0_22 = arith.constant 0 : index
    %c0_23 = arith.constant 0 : index
    %c0_24 = arith.constant 0 : index
    %21 = vector.load %arg6[%c0_22, %c0_23, %c0_24] : memref<1x1x32xf32, #tpu.memory_space<vmem>>, vector<1x1x32xf32>
    %22 = vector.shape_cast %21 : vector<1x1x32xf32> to vector<1x32xf32>
    %23 = vector.extract_strided_slice %20 {offsets = [0, 0, 0], sizes = [4, 8, 32], strides = [1, 1, 1]} : vector<8x8x32xf32> to vector<4x8x32xf32>
    %cst_25 = arith.constant dense<0.000000e+00> : vector<8x32xf32>
    %24 = vector.multi_reduction <add>, %23, %cst_25 [0] : vector<4x8x32xf32> to vector<8x32xf32>
    %25 = vector.broadcast %22 : vector<1x32xf32> to vector<8x32xf32>
    %26 = arith.addf %24, %25 : vector<8x32xf32>
    %c0_26 = arith.constant 0 : index
    %c0_27 = arith.constant 0 : index
    %c0_28 = arith.constant 0 : index
    %27 = vector.load %arg7[%c0_26, %c0_27, %c0_28] : memref<2x8x32xf32, #tpu.memory_space<vmem>>, vector<1x8x32xf32>
    %28 = vector.shape_cast %27 : vector<1x8x32xf32> to vector<8x32xf32>
    %29 = vector.shape_cast %26 : vector<8x32xf32> to vector<1x8x32xf32>
    tpu.vector_store %arg7[%c0_26, %c0_27, %c0_28], %29 {strides = array<i32>} : memref<2x8x32xf32, #tpu.memory_space<vmem>>, vector<1x8x32xf32>,
    %30 = vector.extract_strided_slice %20 {offsets = [4, 0, 0], sizes = [4, 8, 32], strides = [1, 1, 1]} : vector<8x8x32xf32> to vector<4x8x32xf32>
    %cst_29 = arith.constant dense<0.000000e+00> : vector<8x32xf32>
    %31 = vector.multi_reduction <add>, %30, %cst_29 [0] : vector<4x8x32xf32> to vector<8x32xf32>
    %32 = vector.broadcast %22 : vector<1x32xf32> to vector<8x32xf32>
    %33 = arith.addf %31, %32 : vector<8x32xf32>
    %c1 = arith.constant 1 : index
    %c0_30 = arith.constant 0 : index
    %c0_31 = arith.constant 0 : index
    %34 = vector.load %arg7[%c1, %c0_30, %c0_31] : memref<2x8x32xf32, #tpu.memory_space<vmem>>, vector<1x8x32xf32>
    %35 = vector.shape_cast %34 : vector<1x8x32xf32> to vector<8x32xf32>
    %36 = vector.shape_cast %33 : vector<8x32xf32> to vector<1x8x32xf32>
    tpu.vector_store %arg7[%c1, %c0_30, %c0_31], %36 {strides = array<i32>} : memref<2x8x32xf32, #tpu.memory_space<vmem>>, vector<1x8x32xf32>,
    return
  }
}

</mosaic_0001>

<llo_original>
// kernel: tpu_custom_call.1
$region0: #{tpu_custom_call.1}
  #allocation0 [shape = 'u32[]', space=smem, size = 0x4, offset = 0x4, fixed_abs, tag = 'smem constant byte address 0x4 - core index']
  #allocation1 [shape = 'u32[144,128]{1,0:T(1,128)}', space=vmem, size = 0x12000, scoped, tag = 'internal scratch']
  %s0 = inlined_call_operand.hbm [shape: f32[8,8,8], index: 0, kind: input, shape index: {}]
  %s1 = inlined_call_operand.hbm [shape: f32[8,8,8], index: 1, kind: input, shape index: {}]
  %s2 = inlined_call_operand.hbm [shape: f32[8,8,8], index: 2, kind: input, shape index: {}]
  %s3 = inlined_call_operand.hbm [shape: f32[8,8,8], index: 3, kind: input, shape index: {}]
  %s4 = inlined_call_operand.hbm [shape: f32[8,8,32], index: 4, kind: input, shape index: {}]
  %s5 = inlined_call_operand.hbm [shape: f32[8,8,8], index: 5, kind: input, shape index: {}]
  %s6 = inlined_call_operand.vmem [shape: f32[1,1,32], index: 6, kind: input, shape index: {}]
  %s7 = inlined_call_operand.hbm [shape: f32[2,8,32], index: 7, kind: output, shape index: {}]
  %s8 = sld [smem:[#allocation0]]
  $region62: #{tpu_custom_call.1} parent=0
    _
  %s10 = ssub.s32 1, %s8
  %s11 = scalar_select 0, %s10, %s8
  $region1: #{tpu_custom_call.1} parent=0
    #allocation2 [shape = 'u8[32768]{0}', space=vmem, size = 0x8000, scoped, tag = 'input window, operand 0, single buffered']
    #allocation3 [shape = 's32[1]{0}', space=sflag, size = 0x4, scoped, tag = 'scoped memory for tpu_custom_call.1']
    #allocation4 [shape = 's32[1]{0}', space=sflag, size = 0x4, scoped, tag = 'scoped memory for tpu_custom_call.1']
    #allocation5 [shape = 'u8[32768]{0}', space=vmem, size = 0x8000, scoped, tag = 'input window, operand 1, single buffered']
    #allocation6 [shape = 's32[1]{0}', space=sflag, size = 0x4, scoped, tag = 'scoped memory for tpu_custom_call.1']
    #allocation7 [shape = 'u8[32768]{0}', space=vmem, size = 0x8000, scoped, tag = 'input window, operand 2, single buffered']
    #allocation8 [shape = 'u8[32768]{0}', space=vmem, size = 0x8000, scoped, tag = 'input window, operand 3, single buffered']
    #allocation9 [shape = 's32[1]{0}', space=sflag, size = 0x4, scoped, tag = 'scoped memory for tpu_custom_call.1']
    #allocation10 [shape = 'u8[32768]{0}', space=vmem, size = 0x8000, scoped, tag = 'input window, operand 4, single buffered']
    #allocation11 [shape = 'u8[32768]{0}', space=vmem, size = 0x8000, scoped, tag = 'input window, operand 5, single buffered']
    #allocation12 [shape = 's32[1]{0}', space=sflag, size = 0x4, scoped, tag = 'scoped memory for tpu_custom_call.1']
    #allocation13 [shape = 'u8[8192]{0}', space=vmem, size = 0x2000, scoped, tag = 'output window, operand 0, single buffered']
    %12 = vsyncpa [#allocation3], 0
    %13 = vsyncpa [#allocation6], 0
    %14 = vsyncpa [#allocation9], 0
    %15 = vsyncpa [#allocation12], 0
    %16 = vsyncpa [#allocation4], 0
    // Predicated region
    $region2: #{tpu_custom_call.1} parent=1 // pred_check
      _
    $region3: #{tpu_custom_call.1} parent=1 // pred_check_branch
      %18 = sbr.rel (0) target = $region5
    $region4: #{tpu_custom_call.1} parent=1 // pred_region
      %s20 = ssub.s32 1024, 1024
      %21 = vsyncadd [#allocation3], %s20
      %s22 = sshll.u32 [#allocation2], 4
      %s23 = int_to_ptr.vmem [resolvable:$true] %s22
      %28 = dma.hbm_to_vmem [thread:$0]  %s0, 1024, %s23, [#allocation3], 128, 128, 8
    $region5: #{tpu_custom_call.1} parent=1 // pred_fallthru
      _
    // Predicated region
    $region6: #{tpu_custom_call.1} parent=1 // pred_check
      _
    $region7: #{tpu_custom_call.1} parent=1 // pred_check_branch
      %30 = sbr.rel (0) target = $region9
    $region8: #{tpu_custom_call.1} parent=1 // pred_region
      %s32 = ssub.s32 1024, 1024
      %33 = vsyncadd [#allocation6], %s32
      %s34 = sshll.u32 [#allocation5], 4
      %s35 = int_to_ptr.vmem [resolvable:$true] %s34
      %40 = dma.hbm_to_vmem [thread:$0]  %s1, 1024, %s35, [#allocation6], 128, 128, 8
    $region9: #{tpu_custom_call.1} parent=1 // pred_fallthru
      _
    // Predicated region
    $region10: #{tpu_custom_call.1} parent=1 // pred_check
      _
    $region11: #{tpu_custom_call.1} parent=1 // pred_check_branch
      %42 = sbr.rel (0) target = $region13
    $region12: #{tpu_custom_call.1} parent=1 // pred_region
      %s44 = ssub.s32 1024, 1024
      %45 = vsyncadd [#allocation6], %s44
      %s46 = sshll.u32 [#allocation7], 4
      %s47 = int_to_ptr.vmem [resolvable:$true] %s46
      %52 = dma.hbm_to_vmem [thread:$0]  %s2, 1024, %s47, [#allocation6], 128, 128, 8
    $region13: #{tpu_custom_call.1} parent=1 // pred_fallthru
      _
    // Predicated region
    $region14: #{tpu_custom_call.1} parent=1 // pred_check
      _
    $region15: #{tpu_custom_call.1} parent=1 // pred_check_branch
      %54 = sbr.rel (0) target = $region17
    $region16: #{tpu_custom_call.1} parent=1 // pred_region
      %s56 = ssub.s32 1024, 1024
      %57 = vsyncadd [#allocation9], %s56
      %s58 = sshll.u32 [#allocation8], 4
      %s59 = int_to_ptr.vmem [resolvable:$true] %s58
      %64 = dma.hbm_to_vmem [thread:$0]  %s3, 1024, %s59, [#allocation9], 128, 128, 8
    $region17: #{tpu_custom_call.1} parent=1 // pred_fallthru
      _
    // Predicated region
    $region18: #{tpu_custom_call.1} parent=1 // pred_check
      _
    $region19: #{tpu_custom_call.1} parent=1 // pred_check_branch
      %66 = sbr.rel (0) target = $region21
    $region20: #{tpu_custom_call.1} parent=1 // pred_region
      %s68 = ssub.s32 1024, 1024
      %69 = vsyncadd [#allocation9], %s68
      %s70 = sshll.u32 [#allocation10], 4
      %s71 = int_to_ptr.vmem [resolvable:$true] %s70
      %76 = dma.hbm_to_vmem [thread:$0]  %s4, 1024, %s71, [#allocation9], 128, 128, 8
    $region21: #{tpu_custom_call.1} parent=1 // pred_fallthru
      _
    // Predicated region
    $region22: #{tpu_custom_call.1} parent=1 // pred_check
      _
    $region23: #{tpu_custom_call.1} parent=1 // pred_check_branch
      %78 = sbr.rel (0) target = $region25
    $region24: #{tpu_custom_call.1} parent=1 // pred_region
      %s80 = ssub.s32 1024, 1024
      %81 = vsyncadd [#allocation12], %s80
      %s82 = sshll.u32 [#allocation11], 4
      %s83 = int_to_ptr.vmem [resolvable:$true] %s82
      %88 = dma.hbm_to_vmem [thread:$0]  %s5, 1024, %s83, [#allocation12], 128, 128, 8
    $region25: #{tpu_custom_call.1} parent=1 // pred_fallthru
      _
    // Predicated region
    $region26: #{tpu_custom_call.1} parent=1 // pred_check
      _
    $region27: #{tpu_custom_call.1} parent=1 // pred_check_branch
      %90 = sbr.rel (0) target = $region29
    $region28: #{tpu_custom_call.1} parent=1 // pred_region
      _
    $region29: #{tpu_custom_call.1} parent=1 // pred_fallthru
      _
    // Predicated region
    $region30: #{tpu_custom_call.1} parent=1 // pred_check
      _
    $region31: #{tpu_custom_call.1} parent=1 // pred_check_branch
      %92 = sbr.rel (0) target = $region33
    $region32: #{tpu_custom_call.1} parent=1 // pred_region
      %93 = dma.done [#allocation3], 1024
    $region33: #{tpu_custom_call.1} parent=1 // pred_fallthru
      _
    // Predicated region
    $region34: #{tpu_custom_call.1} parent=1 // pred_check
      _
    $region35: #{tpu_custom_call.1} parent=1 // pred_check_branch
      %95 = sbr.rel (0) target = $region37
    $region36: #{tpu_custom_call.1} parent=1 // pred_region
      %96 = dma.done [#allocation6], 1024
    $region37: #{tpu_custom_call.1} parent=1 // pred_fallthru
      _
    // Predicated region
    $region38: #{tpu_custom_call.1} parent=1 // pred_check
      _
    $region39: #{tpu_custom_call.1} parent=1 // pred_check_branch
      %98 = sbr.rel (0) target = $region41
    $region40: #{tpu_custom_call.1} parent=1 // pred_region
      %99 = dma.done [#allocation6], 1024
    $region41: #{tpu_custom_call.1} parent=1 // pred_fallthru
      _
    // Predicated region
    $region42: #{tpu_custom_call.1} parent=1 // pred_check
      _
    $region43: #{tpu_custom_call.1} parent=1 // pred_check_branch
      %101 = sbr.rel (0) target = $region45
    $region44: #{tpu_custom_call.1} parent=1 // pred_region
      %102 = dma.done [#allocation9], 1024
    $region45: #{tpu_custom_call.1} parent=1 // pred_fallthru
      _
    // Predicated region
    $region46: #{tpu_custom_call.1} parent=1 // pred_check
      _
    $region47: #{tpu_custom_call.1} parent=1 // pred_check_branch
      %104 = sbr.rel (0) target = $region49
    $region48: #{tpu_custom_call.1} parent=1 // pred_region
      %105 = dma.done [#allocation9], 1024
    $region49: #{tpu_custom_call.1} parent=1 // pred_fallthru
      _
    // Predicated region
    $region50: #{tpu_custom_call.1} parent=1 // pred_check
      _
    $region51: #{tpu_custom_call.1} parent=1 // pred_check_branch
      %107 = sbr.rel (0) target = $region53
    $region52: #{tpu_custom_call.1} parent=1 // pred_region
      %108 = dma.done [#allocation12], 1024
    $region53: #{tpu_custom_call.1} parent=1 // pred_fallthru
      _
    %v109 = vld [vmem:[#allocation2] sm:$0xff]
    %v110 = vld [vmem:[#allocation2 + $0x8] sm:$0xff]
    %v111 = vld [vmem:[#allocation2 + $0x10] sm:$0xff]
    %v112 = vld [vmem:[#allocation2 + $0x18] sm:$0xff]
    %v113 = vld [vmem:[#allocation2 + $0x20] sm:$0xff]
    %v114 = vld [vmem:[#allocation2 + $0x28] sm:$0xff]
    %v115 = vld [vmem:[#allocation2 + $0x30] sm:$0xff]
    %v116 = vld [vmem:[#allocation2 + $0x38] sm:$0xff]
    %v117 = vld [vmem:[#allocation8] sm:$0xff]
    %v118 = vld [vmem:[#allocation8 + $0x8] sm:$0xff]
    %v119 = vld [vmem:[#allocation8 + $0x10] sm:$0xff]
    %v120 = vld [vmem:[#allocation8 + $0x18] sm:$0xff]
    %v121 = vld [vmem:[#allocation8 + $0x20] sm:$0xff]
    %v122 = vld [vmem:[#allocation8 + $0x28] sm:$0xff]
    %v123 = vld [vmem:[#allocation8 + $0x30] sm:$0xff]
    %v124 = vld [vmem:[#allocation8 + $0x38] sm:$0xff]
    %vm125 = vcmask 64512
    %v127 = vsel %vm125, %v109, 0
    %129 = vmatprep.subr.mxu0 0.0
    %130 = vmatpush1.msra.mxu0 %v117
    %131 = vmatprep.subr.mxu0 0.0
    %132 = vmatpush1.msra.mxu0 0.0
    %133 = vmatprep.subr.mxu0 0.0
    %134 = vmatpush1.msra.mxu0 0.0
    %135 = vmatprep.subr.mxu0 0.0
    %136 = vmatpush1.msra.mxu0 0.0
    %137 = vmatprep.subr.mxu0 0.0
    %138 = vmatpush1.msra.mxu0 0.0
    %139 = vmatprep.subr.mxu0 0.0
    %140 = vmatpush1.msra.mxu0 0.0
    %141 = vmatprep.subr.mxu0 0.0
    %142 = vmatpush1.msra.mxu0 0.0
    %143 = vmatprep.subr.mxu0 0.0
    %144 = vmatpush1.msra.mxu0 0.0
    %145 = vmatprep.subr.mxu0 0.0
    %146 = vmatpush1.msra.mxu0 0.0
    %147 = vmatprep.subr.mxu0 0.0
    %148 = vmatpush1.msra.mxu0 0.0
    %149 = vmatprep.subr.mxu0 0.0
    %150 = vmatpush1.msra.mxu0 0.0
    %151 = vmatprep.subr.mxu0 0.0
    %152 = vmatpush1.msra.mxu0 0.0
    %153 = vmatprep.subr.mxu0 0.0
    %154 = vmatpush1.msra.mxu0 0.0
    %155 = vmatprep.subr.mxu0 0.0
    %156 = vmatpush1.msra.mxu0 0.0
    %157 = vmatprep.subr.mxu0 0.0
    %158 = vmatpush1.msra.mxu0 0.0
    %159 = vmatprep.subr.mxu0 0.0
    %160 = vmatpush1.msra.mxu0 0.0
    %161 = vmatprep.subr.mxu0 0.0
    %162 = vmatpush1.msra.mxu0 0.0
    %163 = vmatprep.subr.mxu0 0.0
    %164 = vmatpush1.msra.mxu0 0.0
    %165 = vmatprep.subr.mxu0 0.0
    %166 = vmatpush1.msra.mxu0 0.0
    %167 = vmatprep.subr.mxu0 0.0
    %168 = vmatpush1.msra.mxu0 0.0
    %169 = vmatprep.subr.mxu0 0.0
    %170 = vmatpush1.msra.mxu0 0.0
    %171 = vmatprep.subr.mxu0 0.0
    %172 = vmatpush1.msra.mxu0 0.0
    %173 = vmatprep.subr.mxu0 0.0
    %174 = vmatpush1.msra.mxu0 0.0
    %175 = vmatprep.subr.mxu0 0.0
    %176 = vmatpush1.msra.mxu0 0.0
    %177 = vmatprep.subr.mxu0 0.0
    %178 = vmatpush1.msra.mxu0 0.0
    %179 = vmatprep.subr.mxu0 0.0
    %180 = vmatpush1.msra.mxu0 0.0
    %181 = vmatprep.subr.mxu0 0.0
    %182 = vmatpush1.msra.mxu0 0.0
    %183 = vmatprep.subr.mxu0 0.0
    %184 = vmatpush1.msra.mxu0 0.0
    %185 = vmatprep.subr.mxu0 0.0
    %186 = vmatpush1.msra.mxu0 0.0
    %187 = vmatprep.subr.mxu0 0.0
    %188 = vmatpush1.msra.mxu0 0.0
    %189 = vmatprep.subr.mxu0 0.0
    %190 = vmatpush1.msra.mxu0 0.0
    %191 = vmatprep.subr.mxu0 0.0
    %192 = vmatpush1.msra.mxu0 0.0
    %193 = vmatprep.mubr.f32.mxu0 0.0
    %194 = vmatmul.mubr.f32.gmra.mrb[0].mxu0 %v127
    %v195 = vpop.f32.mrb[0].mxu0
    %v196 = vadd.f32 0.0, %v195
    %v197 = vpop.f32.mrb[0].mxu0
    %198 = vdwg.mxu0
    %v200 = vsel %vm125, %v110, 0
    %202 = vmatprep.subr.mxu0 0.0
    %203 = vmatpush1.msra.mxu0 %v118
    %204 = vmatprep.subr.mxu0 0.0
    %205 = vmatpush1.msra.mxu0 0.0
    %206 = vmatprep.subr.mxu0 0.0
    %207 = vmatpush1.msra.mxu0 0.0
    %208 = vmatprep.subr.mxu0 0.0
    %209 = vmatpush1.msra.mxu0 0.0
    %210 = vmatprep.subr.mxu0 0.0
    %211 = vmatpush1.msra.mxu0 0.0
    %212 = vmatprep.subr.mxu0 0.0
    %213 = vmatpush1.msra.mxu0 0.0
    %214 = vmatprep.subr.mxu0 0.0
    %215 = vmatpush1.msra.mxu0 0.0
    %216 = vmatprep.subr.mxu0 0.0
    %217 = vmatpush1.msra.mxu0 0.0
    %218 = vmatprep.subr.mxu0 0.0
    %219 = vmatpush1.msra.mxu0 0.0
    %220 = vmatprep.subr.mxu0 0.0
    %221 = vmatpush1.msra.mxu0 0.0
    %222 = vmatprep.subr.mxu0 0.0
    %223 = vmatpush1.msra.mxu0 0.0
    %224 = vmatprep.subr.mxu0 0.0
    %225 = vmatpush1.msra.mxu0 0.0
    %226 = vmatprep.subr.mxu0 0.0
    %227 = vmatpush1.msra.mxu0 0.0
    %228 = vmatprep.subr.mxu0 0.0
    %229 = vmatpush1.msra.mxu0 0.0
    %230 = vmatprep.subr.mxu0 0.0
    %231 = vmatpush1.msra.mxu0 0.0
    %232 = vmatprep.subr.mxu0 0.0
    %233 = vmatpush1.msra.mxu0 0.0
    %234 = vmatprep.subr.mxu0 0.0
    %235 = vmatpush1.msra.mxu0 0.0
    %236 = vmatprep.subr.mxu0 0.0
    %237 = vmatpush1.msra.mxu0 0.0
    %238 = vmatprep.subr.mxu0 0.0
    %239 = vmatpush1.msra.mxu0 0.0
    %240 = vmatprep.subr.mxu0 0.0
    %241 = vmatpush1.msra.mxu0 0.0
    %242 = vmatprep.subr.mxu0 0.0
    %243 = vmatpush1.msra.mxu0 0.0
    %244 = vmatprep.subr.mxu0 0.0
    %245 = vmatpush1.msra.mxu0 0.0
    %246 = vmatprep.subr.mxu0 0.0
    %247 = vmatpush1.msra.mxu0 0.0
    %248 = vmatprep.subr.mxu0 0.0
    %249 = vmatpush1.msra.mxu0 0.0
    %250 = vmatprep.subr.mxu0 0.0
    %251 = vmatpush1.msra.mxu0 0.0
    %252 = vmatprep.subr.mxu0 0.0
    %253 = vmatpush1.msra.mxu0 0.0
    %254 = vmatprep.subr.mxu0 0.0
    %255 = vmatpush1.msra.mxu0 0.0
    %256 = vmatprep.subr.mxu0 0.0
    %257 = vmatpush1.msra.mxu0 0.0
    %258 = vmatprep.subr.mxu0 0.0
    %259 = vmatpush1.msra.mxu0 0.0
    %260 = vmatprep.subr.mxu0 0.0
    %261 = vmatpush1.msra.mxu0 0.0
    %262 = vmatprep.subr.mxu0 0.0
    %263 = vmatpush1.msra.mxu0 0.0
    %264 = vmatprep.subr.mxu0 0.0
    %265 = vmatpush1.msra.mxu0 0.0
    %266 = vmatprep.mubr.f32.mxu0 0.0
    %267 = vmatmul.mubr.f32.gmra.mrb[0].mxu0 %v200
    %v268 = vpop.f32.mrb[0].mxu0
    %v269 = vadd.f32 0.0, %v268
    %v270 = vpop.f32.mrb[0].mxu0
    %271 = vdwg.mxu0
    %v273 = vsel %vm125, %v111, 0
    %275 = vmatprep.subr.mxu0 0.0
    %276 = vmatpush1.msra.mxu0 %v119
    %277 = vmatprep.subr.mxu0 0.0
    %278 = vmatpush1.msra.mxu0 0.0
    %279 = vmatprep.subr.mxu0 0.0
    %280 = vmatpush1.msra.mxu0 0.0
    %281 = vmatprep.subr.mxu0 0.0
    %282 = vmatpush1.msra.mxu0 0.0
    %283 = vmatprep.subr.mxu0 0.0
    %284 = vmatpush1.msra.mxu0 0.0
    %285 = vmatprep.subr.mxu0 0.0
    %286 = vmatpush1.msra.mxu0 0.0
    %287 = vmatprep.subr.mxu0 0.0
    %288 = vmatpush1.msra.mxu0 0.0
    %289 = vmatprep.subr.mxu0 0.0
    %290 = vmatpush1.msra.mxu0 0.0
    %291 = vmatprep.subr.mxu0 0.0
    %292 = vmatpush1.msra.mxu0 0.0
    %293 = vmatprep.subr.mxu0 0.0
    %294 = vmatpush1.msra.mxu0 0.0
    %295 = vmatprep.subr.mxu0 0.0
    %296 = vmatpush1.msra.mxu0 0.0
    %297 = vmatprep.subr.mxu0 0.0
    %298 = vmatpush1.msra.mxu0 0.0
    %299 = vmatprep.subr.mxu0 0.0
    %300 = vmatpush1.msra.mxu0 0.0
    %301 = vmatprep.subr.mxu0 0.0
    %302 = vmatpush1.msra.mxu0 0.0
    %303 = vmatprep.subr.mxu0 0.0
    %304 = vmatpush1.msra.mxu0 0.0
    %305 = vmatprep.subr.mxu0 0.0
    %306 = vmatpush1.msra.mxu0 0.0
    %307 = vmatprep.subr.mxu0 0.0
    %308 = vmatpush1.msra.mxu0 0.0
    %309 = vmatprep.subr.mxu0 0.0
    %310 = vmatpush1.msra.mxu0 0.0
    %311 = vmatprep.subr.mxu0 0.0
    %312 = vmatpush1.msra.mxu0 0.0
    %313 = vmatprep.subr.mxu0 0.0
    %314 = vmatpush1.msra.mxu0 0.0
    %315 = vmatprep.subr.mxu0 0.0
    %316 = vmatpush1.msra.mxu0 0.0
    %317 = vmatprep.subr.mxu0 0.0
    %318 = vmatpush1.msra.mxu0 0.0
    %319 = vmatprep.subr.mxu0 0.0
    %320 = vmatpush1.msra.mxu0 0.0
    %321 = vmatprep.subr.mxu0 0.0
    %322 = vmatpush1.msra.mxu0 0.0
    %323 = vmatprep.subr.mxu0 0.0
    %324 = vmatpush1.msra.mxu0 0.0
    %325 = vmatprep.subr.mxu0 0.0
    %326 = vmatpush1.msra.mxu0 0.0
    %327 = vmatprep.subr.mxu0 0.0
    %328 = vmatpush1.msra.mxu0 0.0
    %329 = vmatprep.subr.mxu0 0.0
    %330 = vmatpush1.msra.mxu0 0.0
    %331 = vmatprep.subr.mxu0 0.0
    %332 = vmatpush1.msra.mxu0 0.0
    %333 = vmatprep.subr.mxu0 0.0
    %334 = vmatpush1.msra.mxu0 0.0
    %335 = vmatprep.subr.mxu0 0.0
    %336 = vmatpush1.msra.mxu0 0.0
    %337 = vmatprep.subr.mxu0 0.0
    %338 = vmatpush1.msra.mxu0 0.0
    %339 = vmatprep.mubr.f32.mxu0 0.0
    %340 = vmatmul.mubr.f32.gmra.mrb[0].mxu0 %v273
    %v341 = vpop.f32.mrb[0].mxu0
    %v342 = vadd.f32 0.0, %v341
    %v343 = vpop.f32.mrb[0].mxu0
    %344 = vdwg.mxu0
    %v346 = vsel %vm125, %v112, 0
    %348 = vmatprep.subr.mxu0 0.0
    %349 = vmatpush1.msra.mxu0 %v120
    %350 = vmatprep.subr.mxu0 0.0
    %351 = vmatpush1.msra.mxu0 0.0
    %352 = vmatprep.subr.mxu0 0.0
    %353 = vmatpush1.msra.mxu0 0.0
    %354 = vmatprep.subr.mxu0 0.0
    %355 = vmatpush1.msra.mxu0 0.0
    %356 = vmatprep.subr.mxu0 0.0
    %357 = vmatpush1.msra.mxu0 0.0
    %358 = vmatprep.subr.mxu0 0.0
    %359 = vmatpush1.msra.mxu0 0.0
    %360 = vmatprep.subr.mxu0 0.0
    %361 = vmatpush1.msra.mxu0 0.0
    %362 = vmatprep.subr.mxu0 0.0
    %363 = vmatpush1.msra.mxu0 0.0
    %364 = vmatprep.subr.mxu0 0.0
    %365 = vmatpush1.msra.mxu0 0.0
    %366 = vmatprep.subr.mxu0 0.0
    %367 = vmatpush1.msra.mxu0 0.0
    %368 = vmatprep.subr.mxu0 0.0
    %369 = vmatpush1.msra.mxu0 0.0
    %370 = vmatprep.subr.mxu0 0.0
    %371 = vmatpush1.msra.mxu0 0.0
    %372 = vmatprep.subr.mxu0 0.0
    %373 = vmatpush1.msra.mxu0 0.0
    %374 = vmatprep.subr.mxu0 0.0
    %375 = vmatpush1.msra.mxu0 0.0
    %376 = vmatprep.subr.mxu0 0.0
    %377 = vmatpush1.msra.mxu0 0.0
    %378 = vmatprep.subr.mxu0 0.0
    %379 = vmatpush1.msra.mxu0 0.0
    %380 = vmatprep.subr.mxu0 0.0
    %381 = vmatpush1.msra.mxu0 0.0
    %382 = vmatprep.subr.mxu0 0.0
    %383 = vmatpush1.msra.mxu0 0.0
    %384 = vmatprep.subr.mxu0 0.0
    %385 = vmatpush1.msra.mxu0 0.0
    %386 = vmatprep.subr.mxu0 0.0
    %387 = vmatpush1.msra.mxu0 0.0
    %388 = vmatprep.subr.mxu0 0.0
    %389 = vmatpush1.msra.mxu0 0.0
    %390 = vmatprep.subr.mxu0 0.0
    %391 = vmatpush1.msra.mxu0 0.0
    %392 = vmatprep.subr.mxu0 0.0
    %393 = vmatpush1.msra.mxu0 0.0
    %394 = vmatprep.subr.mxu0 0.0
    %395 = vmatpush1.msra.mxu0 0.0
    %396 = vmatprep.subr.mxu0 0.0
    %397 = vmatpush1.msra.mxu0 0.0
    %398 = vmatprep.subr.mxu0 0.0
    %399 = vmatpush1.msra.mxu0 0.0
    %400 = vmatprep.subr.mxu0 0.0
    %401 = vmatpush1.msra.mxu0 0.0
    %402 = vmatprep.subr.mxu0 0.0
    %403 = vmatpush1.msra.mxu0 0.0
    %404 = vmatprep.subr.mxu0 0.0
    %405 = vmatpush1.msra.mxu0 0.0
    %406 = vmatprep.subr.mxu0 0.0
    %407 = vmatpush1.msra.mxu0 0.0
    %408 = vmatprep.subr.mxu0 0.0
    %409 = vmatpush1.msra.mxu0 0.0
    %410 = vmatprep.subr.mxu0 0.0
    %411 = vmatpush1.msra.mxu0 0.0
    %412 = vmatprep.mubr.f32.mxu0 0.0
    %413 = vmatmul.mubr.f32.gmra.mrb[0].mxu0 %v346
    %v414 = vpop.f32.mrb[0].mxu0
    %v415 = vadd.f32 0.0, %v414
    %v416 = vpop.f32.mrb[0].mxu0
    %417 = vdwg.mxu0
    %v419 = vsel %vm125, %v113, 0
    %421 = vmatprep.subr.mxu0 0.0
    %422 = vmatpush1.msra.mxu0 %v121
    %423 = vmatprep.subr.mxu0 0.0
    %424 = vmatpush1.msra.mxu0 0.0
    %425 = vmatprep.subr.mxu0 0.0
    %426 = vmatpush1.msra.mxu0 0.0
    %427 = vmatprep.subr.mxu0 0.0
    %428 = vmatpush1.msra.mxu0 0.0
    %429 = vmatprep.subr.mxu0 0.0
    %430 = vmatpush1.msra.mxu0 0.0
    %431 = vmatprep.subr.mxu0 0.0
    %432 = vmatpush1.msra.mxu0 0.0
    %433 = vmatprep.subr.mxu0 0.0
    %434 = vmatpush1.msra.mxu0 0.0
    %435 = vmatprep.subr.mxu0 0.0
    %436 = vmatpush1.msra.mxu0 0.0
    %437 = vmatprep.subr.mxu0 0.0
    %438 = vmatpush1.msra.mxu0 0.0
    %439 = vmatprep.subr.mxu0 0.0
    %440 = vmatpush1.msra.mxu0 0.0
    %441 = vmatprep.subr.mxu0 0.0
    %442 = vmatpush1.msra.mxu0 0.0
    %443 = vmatprep.subr.mxu0 0.0
    %444 = vmatpush1.msra.mxu0 0.0
    %445 = vmatprep.subr.mxu0 0.0
    %446 = vmatpush1.msra.mxu0 0.0
    %447 = vmatprep.subr.mxu0 0.0
    %448 = vmatpush1.msra.mxu0 0.0
    %449 = vmatprep.subr.mxu0 0.0
    %450 = vmatpush1.msra.mxu0 0.0
    %451 = vmatprep.subr.mxu0 0.0
    %452 = vmatpush1.msra.mxu0 0.0
    %453 = vmatprep.subr.mxu0 0.0
    %454 = vmatpush1.msra.mxu0 0.0
    %455 = vmatprep.subr.mxu0 0.0
    %456 = vmatpush1.msra.mxu0 0.0
    %457 = vmatprep.subr.mxu0 0.0
    %458 = vmatpush1.msra.mxu0 0.0
    %459 = vmatprep.subr.mxu0 0.0
    %460 = vmatpush1.msra.mxu0 0.0
    %461 = vmatprep.subr.mxu0 0.0
    %462 = vmatpush1.msra.mxu0 0.0
    %463 = vmatprep.subr.mxu0 0.0
    %464 = vmatpush1.msra.mxu0 0.0
    %465 = vmatprep.subr.mxu0 0.0
    %466 = vmatpush1.msra.mxu0 0.0
    %467 = vmatprep.subr.mxu0 0.0
    %468 = vmatpush1.msra.mxu0 0.0
    %469 = vmatprep.subr.mxu0 0.0
    %470 = vmatpush1.msra.mxu0 0.0
    %471 = vmatprep.subr.mxu0 0.0
    %472 = vmatpush1.msra.mxu0 0.0
    %473 = vmatprep.subr.mxu0 0.0
    %474 = vmatpush1.msra.mxu0 0.0
    %475 = vmatprep.subr.mxu0 0.0
    %476 = vmatpush1.msra.mxu0 0.0
    %477 = vmatprep.subr.mxu0 0.0
    %478 = vmatpush1.msra.mxu0 0.0
    %479 = vmatprep.subr.mxu0 0.0
    %480 = vmatpush1.msra.mxu0 0.0
    %481 = vmatprep.subr.mxu0 0.0
    %482 = vmatpush1.msra.mxu0 0.0
    %483 = vmatprep.subr.mxu0 0.0
    %484 = vmatpush1.msra.mxu0 0.0
    %485 = vmatprep.mubr.f32.mxu0 0.0
    %486 = vmatmul.mubr.f32.gmra.mrb[0].mxu0 %v419
    %v487 = vpop.f32.mrb[0].mxu0
    %v488 = vadd.f32 0.0, %v487
    %v489 = vpop.f32.mrb[0].mxu0
    %490 = vdwg.mxu0
    %v492 = vsel %vm125, %v114, 0
    %494 = vmatprep.subr.mxu0 0.0
    %495 = vmatpush1.msra.mxu0 %v122
    %496 = vmatprep.subr.mxu0 0.0
    %497 = vmatpush1.msra.mxu0 0.0
    %498 = vmatprep.subr.mxu0 0.0
    %499 = vmatpush1.msra.mxu0 0.0
    %500 = vmatprep.subr.mxu0 0.0
    %501 = vmatpush1.msra.mxu0 0.0
    %502 = vmatprep.subr.mxu0 0.0
    %503 = vmatpush1.msra.mxu0 0.0
    %504 = vmatprep.subr.mxu0 0.0
    %505 = vmatpush1.msra.mxu0 0.0
    %506 = vmatprep.subr.mxu0 0.0
    %507 = vmatpush1.msra.mxu0 0.0
    %508 = vmatprep.subr.mxu0 0.0
    %509 = vmatpush1.msra.mxu0 0.0
    %510 = vmatprep.subr.mxu0 0.0
    %511 = vmatpush1.msra.mxu0 0.0
    %512 = vmatprep.subr.mxu0 0.0
    %513 = vmatpush1.msra.mxu0 0.0
    %514 = vmatprep.subr.mxu0 0.0
    %515 = vmatpush1.msra.mxu0 0.0
    %516 = vmatprep.subr.mxu0 0.0
    %517 = vmatpush1.msra.mxu0 0.0
    %518 = vmatprep.subr.mxu0 0.0
    %519 = vmatpush1.msra.mxu0 0.0
    %520 = vmatprep.subr.mxu0 0.0
    %521 = vmatpush1.msra.mxu0 0.0
    %522 = vmatprep.subr.mxu0 0.0
    %523 = vmatpush1.msra.mxu0 0.0
    %524 = vmatprep.subr.mxu0 0.0
    %525 = vmatpush1.msra.mxu0 0.0
    %526 = vmatprep.subr.mxu0 0.0
    %527 = vmatpush1.msra.mxu0 0.0
    %528 = vmatprep.subr.mxu0 0.0
    %529 = vmatpush1.msra.mxu0 0.0
    %530 = vmatprep.subr.mxu0 0.0
    %531 = vmatpush1.msra.mxu0 0.0
    %532 = vmatprep.subr.mxu0 0.0
    %533 = vmatpush1.msra.mxu0 0.0
    %534 = vmatprep.subr.mxu0 0.0
    %535 = vmatpush1.msra.mxu0 0.0
    %536 = vmatprep.subr.mxu0 0.0
    %537 = vmatpush1.msra.mxu0 0.0
    %538 = vmatprep.subr.mxu0 0.0
    %539 = vmatpush1.msra.mxu0 0.0
    %540 = vmatprep.subr.mxu0 0.0
    %541 = vmatpush1.msra.mxu0 0.0
    %542 = vmatprep.subr.mxu0 0.0
    %543 = vmatpush1.msra.mxu0 0.0
    %544 = vmatprep.subr.mxu0 0.0
    %545 = vmatpush1.msra.mxu0 0.0
    %546 = vmatprep.subr.mxu0 0.0
    %547 = vmatpush1.msra.mxu0 0.0
    %548 = vmatprep.subr.mxu0 0.0
    %549 = vmatpush1.msra.mxu0 0.0
    %550 = vmatprep.subr.mxu0 0.0
    %551 = vmatpush1.msra.mxu0 0.0
    %552 = vmatprep.subr.mxu0 0.0
    %553 = vmatpush1.msra.mxu0 0.0
    %554 = vmatprep.subr.mxu0 0.0
    %555 = vmatpush1.msra.mxu0 0.0
    %556 = vmatprep.subr.mxu0 0.0
    %557 = vmatpush1.msra.mxu0 0.0
    %558 = vmatprep.mubr.f32.mxu0 0.0
    %559 = vmatmul.mubr.f32.gmra.mrb[0].mxu0 %v492
    %v560 = vpop.f32.mrb[0].mxu0
    %v561 = vadd.f32 0.0, %v560
    %v562 = vpop.f32.mrb[0].mxu0
    %563 = vdwg.mxu0
    %v565 = vsel %vm125, %v115, 0
    %567 = vmatprep.subr.mxu0 0.0
    %568 = vmatpush1.msra.mxu0 %v123
    %569 = vmatprep.subr.mxu0 0.0
    %570 = vmatpush1.msra.mxu0 0.0
    %571 = vmatprep.subr.mxu0 0.0
    %572 = vmatpush1.msra.mxu0 0.0
    %573 = vmatprep.subr.mxu0 0.0
    %574 = vmatpush1.msra.mxu0 0.0
    %575 = vmatprep.subr.mxu0 0.0
    %576 = vmatpush1.msra.mxu0 0.0
    %577 = vmatprep.subr.mxu0 0.0
    %578 = vmatpush1.msra.mxu0 0.0
    %579 = vmatprep.subr.mxu0 0.0
    %580 = vmatpush1.msra.mxu0 0.0
    %581 = vmatprep.subr.mxu0 0.0
    %582 = vmatpush1.msra.mxu0 0.0
    %583 = vmatprep.subr.mxu0 0.0
    %584 = vmatpush1.msra.mxu0 0.0
    %585 = vmatprep.subr.mxu0 0.0
    %586 = vmatpush1.msra.mxu0 0.0
    %587 = vmatprep.subr.mxu0 0.0
    %588 = vmatpush1.msra.mxu0 0.0
    %589 = vmatprep.subr.mxu0 0.0
    %590 = vmatpush1.msra.mxu0 0.0
    %591 = vmatprep.subr.mxu0 0.0
    %592 = vmatpush1.msra.mxu0 0.0
    %593 = vmatprep.subr.mxu0 0.0
    %594 = vmatpush1.msra.mxu0 0.0
    %595 = vmatprep.subr.mxu0 0.0
    %596 = vmatpush1.msra.mxu0 0.0
    %597 = vmatprep.subr.mxu0 0.0
    %598 = vmatpush1.msra.mxu0 0.0
    %599 = vmatprep.subr.mxu0 0.0
    %600 = vmatpush1.msra.mxu0 0.0
    %601 = vmatprep.subr.mxu0 0.0
    %602 = vmatpush1.msra.mxu0 0.0
    %603 = vmatprep.subr.mxu0 0.0
    %604 = vmatpush1.msra.mxu0 0.0
    %605 = vmatprep.subr.mxu0 0.0
    %606 = vmatpush1.msra.mxu0 0.0
    %607 = vmatprep.subr.mxu0 0.0
    %608 = vmatpush1.msra.mxu0 0.0
    %609 = vmatprep.subr.mxu0 0.0
    %610 = vmatpush1.msra.mxu0 0.0
    %611 = vmatprep.subr.mxu0 0.0
    %612 = vmatpush1.msra.mxu0 0.0
    %613 = vmatprep.subr.mxu0 0.0
    %614 = vmatpush1.msra.mxu0 0.0
    %615 = vmatprep.subr.mxu0 0.0
    %616 = vmatpush1.msra.mxu0 0.0
    %617 = vmatprep.subr.mxu0 0.0
    %618 = vmatpush1.msra.mxu0 0.0
    %619 = vmatprep.subr.mxu0 0.0
    %620 = vmatpush1.msra.mxu0 0.0
    %621 = vmatprep.subr.mxu0 0.0
    %622 = vmatpush1.msra.mxu0 0.0
    %623 = vmatprep.subr.mxu0 0.0
    %624 = vmatpush1.msra.mxu0 0.0
    %625 = vmatprep.subr.mxu0 0.0
    %626 = vmatpush1.msra.mxu0 0.0
    %627 = vmatprep.subr.mxu0 0.0
    %628 = vmatpush1.msra.mxu0 0.0
    %629 = vmatprep.subr.mxu0 0.0
    %630 = vmatpush1.msra.mxu0 0.0
    %631 = vmatprep.mubr.f32.mxu0 0.0
    %632 = vmatmul.mubr.f32.gmra.mrb[0].mxu0 %v565
    %v633 = vpop.f32.mrb[0].mxu0
    %v634 = vadd.f32 0.0, %v633
    %v635 = vpop.f32.mrb[0].mxu0
    %636 = vdwg.mxu0
    %v638 = vsel %vm125, %v116, 0
    %640 = vmatprep.subr.mxu0 0.0
    %641 = vmatpush1.msra.mxu0 %v124
    %642 = vmatprep.subr.mxu0 0.0
    %643 = vmatpush1.msra.mxu0 0.0
    %644 = vmatprep.subr.mxu0 0.0
    %645 = vmatpush1.msra.mxu0 0.0
    %646 = vmatprep.subr.mxu0 0.0
    %647 = vmatpush1.msra.mxu0 0.0
    %648 = vmatprep.subr.mxu0 0.0
    %649 = vmatpush1.msra.mxu0 0.0
    %650 = vmatprep.subr.mxu0 0.0
    %651 = vmatpush1.msra.mxu0 0.0
    %652 = vmatprep.subr.mxu0 0.0
    %653 = vmatpush1.msra.mxu0 0.0
    %654 = vmatprep.subr.mxu0 0.0
    %655 = vmatpush1.msra.mxu0 0.0
    %656 = vmatprep.subr.mxu0 0.0
    %657 = vmatpush1.msra.mxu0 0.0
    %658 = vmatprep.subr.mxu0 0.0
    %659 = vmatpush1.msra.mxu0 0.0
    %660 = vmatprep.subr.mxu0 0.0
    %661 = vmatpush1.msra.mxu0 0.0
    %662 = vmatprep.subr.mxu0 0.0
    %663 = vmatpush1.msra.mxu0 0.0
    %664 = vmatprep.subr.mxu0 0.0
    %665 = vmatpush1.msra.mxu0 0.0
    %666 = vmatprep.subr.mxu0 0.0
    %667 = vmatpush1.msra.mxu0 0.0
    %668 = vmatprep.subr.mxu0 0.0
    %669 = vmatpush1.msra.mxu0 0.0
    %670 = vmatprep.subr.mxu0 0.0
    %671 = vmatpush1.msra.mxu0 0.0
    %672 = vmatprep.subr.mxu0 0.0
    %673 = vmatpush1.msra.mxu0 0.0
    %674 = vmatprep.subr.mxu0 0.0
    %675 = vmatpush1.msra.mxu0 0.0
    %676 = vmatprep.subr.mxu0 0.0
    %677 = vmatpush1.msra.mxu0 0.0
    %678 = vmatprep.subr.mxu0 0.0
    %679 = vmatpush1.msra.mxu0 0.0
    %680 = vmatprep.subr.mxu0 0.0
    %681 = vmatpush1.msra.mxu0 0.0
    %682 = vmatprep.subr.mxu0 0.0
    %683 = vmatpush1.msra.mxu0 0.0
    %684 = vmatprep.subr.mxu0 0.0
    %685 = vmatpush1.msra.mxu0 0.0
    %686 = vmatprep.subr.mxu0 0.0
    %687 = vmatpush1.msra.mxu0 0.0
    %688 = vmatprep.subr.mxu0 0.0
    %689 = vmatpush1.msra.mxu0 0.0
    %690 = vmatprep.subr.mxu0 0.0
    %691 = vmatpush1.msra.mxu0 0.0
    %692 = vmatprep.subr.mxu0 0.0
    %693 = vmatpush1.msra.mxu0 0.0
    %694 = vmatprep.subr.mxu0 0.0
    %695 = vmatpush1.msra.mxu0 0.0
    %696 = vmatprep.subr.mxu0 0.0
    %697 = vmatpush1.msra.mxu0 0.0
    %698 = vmatprep.subr.mxu0 0.0
    %699 = vmatpush1.msra.mxu0 0.0
    %700 = vmatprep.subr.mxu0 0.0
    %701 = vmatpush1.msra.mxu0 0.0
    %702 = vmatprep.subr.mxu0 0.0
    %703 = vmatpush1.msra.mxu0 0.0
    %704 = vmatprep.mubr.f32.mxu0 0.0
    %705 = vmatmul.mubr.f32.gmra.mrb[0].mxu0 %v638
    %v706 = vpop.f32.mrb[0].mxu0
    %v707 = vadd.f32 0.0, %v706
    %v708 = vpop.f32.mrb[0].mxu0
    %709 = vdwg.mxu0
    %v710 = vld [vmem:[#allocation5] sm:$0xff]
    %v711 = vld [vmem:[#allocation5 + $0x8] sm:$0xff]
    %v712 = vld [vmem:[#allocation5 + $0x10] sm:$0xff]
    %v713 = vld [vmem:[#allocation5 + $0x18] sm:$0xff]
    %v714 = vld [vmem:[#allocation5 + $0x20] sm:$0xff]
    %v715 = vld [vmem:[#allocation5 + $0x28] sm:$0xff]
    %v716 = vld [vmem:[#allocation5 + $0x30] sm:$0xff]
    %v717 = vld [vmem:[#allocation5 + $0x38] sm:$0xff]
    %v718 = vld [vmem:[#allocation11] sm:$0xff]
    %v719 = vld [vmem:[#allocation11 + $0x8] sm:$0xff]
    %v720 = vld [vmem:[#allocation11 + $0x10] sm:$0xff]
    %v721 = vld [vmem:[#allocation11 + $0x18] sm:$0xff]
    %v722 = vld [vmem:[#allocation11 + $0x20] sm:$0xff]
    %v723 = vld [vmem:[#allocation11 + $0x28] sm:$0xff]
    %v724 = vld [vmem:[#allocation11 + $0x30] sm:$0xff]
    %v725 = vld [vmem:[#allocation11 + $0x38] sm:$0xff]
    %v727 = vsel %vm125, %v196, 0
    %v730 = vsel %vm125, %v710, 0
    %732 = vmatprep.subr.mxu0 0.0
    %733 = vmatpush1.xpose.msra.mxu0 %v730
    %734 = vmatprep.subr.mxu0 0.0
    %735 = vmatpush1.xpose.msra.mxu0 0.0
    %736 = vmatprep.subr.mxu0 0.0
    %737 = vmatpush1.xpose.msra.mxu0 0.0
    %738 = vmatprep.subr.mxu0 0.0
    %739 = vmatpush1.xpose.msra.mxu0 0.0
    %740 = vmatprep.subr.mxu0 0.0
    %741 = vmatpush1.xpose.msra.mxu0 0.0
    %742 = vmatprep.subr.mxu0 0.0
    %743 = vmatpush1.xpose.msra.mxu0 0.0
    %744 = vmatprep.subr.mxu0 0.0
    %745 = vmatpush1.xpose.msra.mxu0 0.0
    %746 = vmatprep.subr.mxu0 0.0
    %747 = vmatpush1.xpose.msra.mxu0 0.0
    %748 = vmatprep.subr.mxu0 0.0
    %749 = vmatpush1.xpose.msra.mxu0 0.0
    %750 = vmatprep.subr.mxu0 0.0
    %751 = vmatpush1.xpose.msra.mxu0 0.0
    %752 = vmatprep.subr.mxu0 0.0
    %753 = vmatpush1.xpose.msra.mxu0 0.0
    %754 = vmatprep.subr.mxu0 0.0
    %755 = vmatpush1.xpose.msra.mxu0 0.0
    %756 = vmatprep.subr.mxu0 0.0
    %757 = vmatpush1.xpose.msra.mxu0 0.0
    %758 = vmatprep.subr.mxu0 0.0
    %759 = vmatpush1.xpose.msra.mxu0 0.0
    %760 = vmatprep.subr.mxu0 0.0
    %761 = vmatpush1.xpose.msra.mxu0 0.0
    %762 = vmatprep.subr.mxu0 0.0
    %763 = vmatpush1.xpose.msra.mxu0 0.0
    %764 = vmatprep.subr.mxu0 0.0
    %765 = vmatpush1.xpose.msra.mxu0 0.0
    %766 = vmatprep.subr.mxu0 0.0
    %767 = vmatpush1.xpose.msra.mxu0 0.0
    %768 = vmatprep.subr.mxu0 0.0
    %769 = vmatpush1.xpose.msra.mxu0 0.0
    %770 = vmatprep.subr.mxu0 0.0
    %771 = vmatpush1.xpose.msra.mxu0 0.0
    %772 = vmatprep.subr.mxu0 0.0
    %773 = vmatpush1.xpose.msra.mxu0 0.0
    %774 = vmatprep.subr.mxu0 0.0
    %775 = vmatpush1.xpose.msra.mxu0 0.0
    %776 = vmatprep.subr.mxu0 0.0
    %777 = vmatpush1.xpose.msra.mxu0 0.0
    %778 = vmatprep.subr.mxu0 0.0
    %779 = vmatpush1.xpose.msra.mxu0 0.0
    %780 = vmatprep.subr.mxu0 0.0
    %781 = vmatpush1.xpose.msra.mxu0 0.0
    %782 = vmatprep.subr.mxu0 0.0
    %783 = vmatpush1.xpose.msra.mxu0 0.0
    %784 = vmatprep.subr.mxu0 0.0
    %785 = vmatpush1.xpose.msra.mxu0 0.0
    %786 = vmatprep.subr.mxu0 0.0
    %787 = vmatpush1.xpose.msra.mxu0 0.0
    %788 = vmatprep.subr.mxu0 0.0
    %789 = vmatpush1.xpose.msra.mxu0 0.0
    %790 = vmatprep.subr.mxu0 0.0
    %791 = vmatpush1.xpose.msra.mxu0 0.0
    %792 = vmatprep.subr.mxu0 0.0
    %793 = vmatpush1.xpose.msra.mxu0 0.0
    %794 = vmatprep.subr.mxu0 0.0
    %795 = vmatpush1.xpose.msra.mxu0 0.0
    %796 = vmatprep.mubr.f32.mxu0 0.0
    %797 = vmatmul.mubr.f32.gmra.mrb[0].mxu0 %v727
    %v798 = vpop.f32.mrb[0].mxu0
    %v799 = vadd.f32 %v718, %v798
    %v800 = vpop.f32.mrb[0].mxu0
    %801 = vdwg.mxu0
    %v803 = vsel %vm125, %v269, 0
    %v806 = vsel %vm125, %v711, 0
    %808 = vmatprep.subr.mxu0 0.0
    %809 = vmatpush1.xpose.msra.mxu0 %v806
    %810 = vmatprep.subr.mxu0 0.0
    %811 = vmatpush1.xpose.msra.mxu0 0.0
    %812 = vmatprep.subr.mxu0 0.0
    %813 = vmatpush1.xpose.msra.mxu0 0.0
    %814 = vmatprep.subr.mxu0 0.0
    %815 = vmatpush1.xpose.msra.mxu0 0.0
    %816 = vmatprep.subr.mxu0 0.0
    %817 = vmatpush1.xpose.msra.mxu0 0.0
    %818 = vmatprep.subr.mxu0 0.0
    %819 = vmatpush1.xpose.msra.mxu0 0.0
    %820 = vmatprep.subr.mxu0 0.0
    %821 = vmatpush1.xpose.msra.mxu0 0.0
    %822 = vmatprep.subr.mxu0 0.0
    %823 = vmatpush1.xpose.msra.mxu0 0.0
    %824 = vmatprep.subr.mxu0 0.0
    %825 = vmatpush1.xpose.msra.mxu0 0.0
    %826 = vmatprep.subr.mxu0 0.0
    %827 = vmatpush1.xpose.msra.mxu0 0.0
    %828 = vmatprep.subr.mxu0 0.0
    %829 = vmatpush1.xpose.msra.mxu0 0.0
    %830 = vmatprep.subr.mxu0 0.0
    %831 = vmatpush1.xpose.msra.mxu0 0.0
    %832 = vmatprep.subr.mxu0 0.0
    %833 = vmatpush1.xpose.msra.mxu0 0.0
    %834 = vmatprep.subr.mxu0 0.0
    %835 = vmatpush1.xpose.msra.mxu0 0.0
    %836 = vmatprep.subr.mxu0 0.0
    %837 = vmatpush1.xpose.msra.mxu0 0.0
    %838 = vmatprep.subr.mxu0 0.0
    %839 = vmatpush1.xpose.msra.mxu0 0.0
    %840 = vmatprep.subr.mxu0 0.0
    %841 = vmatpush1.xpose.msra.mxu0 0.0
    %842 = vmatprep.subr.mxu0 0.0
    %843 = vmatpush1.xpose.msra.mxu0 0.0
    %844 = vmatprep.subr.mxu0 0.0
    %845 = vmatpush1.xpose.msra.mxu0 0.0
    %846 = vmatprep.subr.mxu0 0.0
    %847 = vmatpush1.xpose.msra.mxu0 0.0
    %848 = vmatprep.subr.mxu0 0.0
    %849 = vmatpush1.xpose.msra.mxu0 0.0
    %850 = vmatprep.subr.mxu0 0.0
    %851 = vmatpush1.xpose.msra.mxu0 0.0
    %852 = vmatprep.subr.mxu0 0.0
    %853 = vmatpush1.xpose.msra.mxu0 0.0
    %854 = vmatprep.subr.mxu0 0.0
    %855 = vmatpush1.xpose.msra.mxu0 0.0
    %856 = vmatprep.subr.mxu0 0.0
    %857 = vmatpush1.xpose.msra.mxu0 0.0
    %858 = vmatprep.subr.mxu0 0.0
    %859 = vmatpush1.xpose.msra.mxu0 0.0
    %860 = vmatprep.subr.mxu0 0.0
    %861 = vmatpush1.xpose.msra.mxu0 0.0
    %862 = vmatprep.subr.mxu0 0.0
    %863 = vmatpush1.xpose.msra.mxu0 0.0
    %864 = vmatprep.subr.mxu0 0.0
    %865 = vmatpush1.xpose.msra.mxu0 0.0
    %866 = vmatprep.subr.mxu0 0.0
    %867 = vmatpush1.xpose.msra.mxu0 0.0
    %868 = vmatprep.subr.mxu0 0.0
    %869 = vmatpush1.xpose.msra.mxu0 0.0
    %870 = vmatprep.subr.mxu0 0.0
    %871 = vmatpush1.xpose.msra.mxu0 0.0
    %872 = vmatprep.mubr.f32.mxu0 0.0
    %873 = vmatmul.mubr.f32.gmra.mrb[0].mxu0 %v803
    %v874 = vpop.f32.mrb[0].mxu0
    %v875 = vadd.f32 %v719, %v874
    %v876 = vpop.f32.mrb[0].mxu0
    %877 = vdwg.mxu0
    %v879 = vsel %vm125, %v342, 0
    %v882 = vsel %vm125, %v712, 0
    %884 = vmatprep.subr.mxu0 0.0
    %885 = vmatpush1.xpose.msra.mxu0 %v882
    %886 = vmatprep.subr.mxu0 0.0
    %887 = vmatpush1.xpose.msra.mxu0 0.0
    %888 = vmatprep.subr.mxu0 0.0
    %889 = vmatpush1.xpose.msra.mxu0 0.0
    %890 = vmatprep.subr.mxu0 0.0
    %891 = vmatpush1.xpose.msra.mxu0 0.0
    %892 = vmatprep.subr.mxu0 0.0
    %893 = vmatpush1.xpose.msra.mxu0 0.0
    %894 = vmatprep.subr.mxu0 0.0
    %895 = vmatpush1.xpose.msra.mxu0 0.0
    %896 = vmatprep.subr.mxu0 0.0
    %897 = vmatpush1.xpose.msra.mxu0 0.0
    %898 = vmatprep.subr.mxu0 0.0
    %899 = vmatpush1.xpose.msra.mxu0 0.0
    %900 = vmatprep.subr.mxu0 0.0
    %901 = vmatpush1.xpose.msra.mxu0 0.0
    %902 = vmatprep.subr.mxu0 0.0
    %903 = vmatpush1.xpose.msra.mxu0 0.0
    %904 = vmatprep.subr.mxu0 0.0
    %905 = vmatpush1.xpose.msra.mxu0 0.0
    %906 = vmatprep.subr.mxu0 0.0
    %907 = vmatpush1.xpose.msra.mxu0 0.0
    %908 = vmatprep.subr.mxu0 0.0
    %909 = vmatpush1.xpose.msra.mxu0 0.0
    %910 = vmatprep.subr.mxu0 0.0
    %911 = vmatpush1.xpose.msra.mxu0 0.0
    %912 = vmatprep.subr.mxu0 0.0
    %913 = vmatpush1.xpose.msra.mxu0 0.0
    %914 = vmatprep.subr.mxu0 0.0
    %915 = vmatpush1.xpose.msra.mxu0 0.0
    %916 = vmatprep.subr.mxu0 0.0
    %917 = vmatpush1.xpose.msra.mxu0 0.0
    %918 = vmatprep.subr.mxu0 0.0
    %919 = vmatpush1.xpose.msra.mxu0 0.0
    %920 = vmatprep.subr.mxu0 0.0
    %921 = vmatpush1.xpose.msra.mxu0 0.0
    %922 = vmatprep.subr.mxu0 0.0
    %923 = vmatpush1.xpose.msra.mxu0 0.0
    %924 = vmatprep.subr.mxu0 0.0
    %925 = vmatpush1.xpose.msra.mxu0 0.0
    %926 = vmatprep.subr.mxu0 0.0
    %927 = vmatpush1.xpose.msra.mxu0 0.0
    %928 = vmatprep.subr.mxu0 0.0
    %929 = vmatpush1.xpose.msra.mxu0 0.0
    %930 = vmatprep.subr.mxu0 0.0
    %931 = vmatpush1.xpose.msra.mxu0 0.0
    %932 = vmatprep.subr.mxu0 0.0
    %933 = vmatpush1.xpose.msra.mxu0 0.0
    %934 = vmatprep.subr.mxu0 0.0
    %935 = vmatpush1.xpose.msra.mxu0 0.0
    %936 = vmatprep.subr.mxu0 0.0
    %937 = vmatpush1.xpose.msra.mxu0 0.0
    %938 = vmatprep.subr.mxu0 0.0
    %939 = vmatpush1.xpose.msra.mxu0 0.0
    %940 = vmatprep.subr.mxu0 0.0
    %941 = vmatpush1.xpose.msra.mxu0 0.0
    %942 = vmatprep.subr.mxu0 0.0
    %943 = vmatpush1.xpose.msra.mxu0 0.0
    %944 = vmatprep.subr.mxu0 0.0
    %945 = vmatpush1.xpose.msra.mxu0 0.0
    %946 = vmatprep.subr.mxu0 0.0
    %947 = vmatpush1.xpose.msra.mxu0 0.0
    %948 = vmatprep.mubr.f32.mxu0 0.0
    %949 = vmatmul.mubr.f32.gmra.mrb[0].mxu0 %v879
    %v950 = vpop.f32.mrb[0].mxu0
    %v951 = vadd.f32 %v720, %v950
    %v952 = vpop.f32.mrb[0].mxu0
    %953 = vdwg.mxu0
    %v955 = vsel %vm125, %v415, 0
    %v958 = vsel %vm125, %v713, 0
    %960 = vmatprep.subr.mxu0 0.0
    %961 = vmatpush1.xpose.msra.mxu0 %v958
    %962 = vmatprep.subr.mxu0 0.0
    %963 = vmatpush1.xpose.msra.mxu0 0.0
    %964 = vmatprep.subr.mxu0 0.0
    %965 = vmatpush1.xpose.msra.mxu0 0.0
    %966 = vmatprep.subr.mxu0 0.0
    %967 = vmatpush1.xpose.msra.mxu0 0.0
    %968 = vmatprep.subr.mxu0 0.0
    %969 = vmatpush1.xpose.msra.mxu0 0.0
    %970 = vmatprep.subr.mxu0 0.0
    %971 = vmatpush1.xpose.msra.mxu0 0.0
    %972 = vmatprep.subr.mxu0 0.0
    %973 = vmatpush1.xpose.msra.mxu0 0.0
    %974 = vmatprep.subr.mxu0 0.0
    %975 = vmatpush1.xpose.msra.mxu0 0.0
    %976 = vmatprep.subr.mxu0 0.0
    %977 = vmatpush1.xpose.msra.mxu0 0.0
    %978 = vmatprep.subr.mxu0 0.0
    %979 = vmatpush1.xpose.msra.mxu0 0.0
    %980 = vmatprep.subr.mxu0 0.0
    %981 = vmatpush1.xpose.msra.mxu0 0.0
    %982 = vmatprep.subr.mxu0 0.0
    %983 = vmatpush1.xpose.msra.mxu0 0.0
    %984 = vmatprep.subr.mxu0 0.0
    %985 = vmatpush1.xpose.msra.mxu0 0.0
    %986 = vmatprep.subr.mxu0 0.0
    %987 = vmatpush1.xpose.msra.mxu0 0.0
    %988 = vmatprep.subr.mxu0 0.0
    %989 = vmatpush1.xpose.msra.mxu0 0.0
    %990 = vmatprep.subr.mxu0 0.0
    %991 = vmatpush1.xpose.msra.mxu0 0.0
    %992 = vmatprep.subr.mxu0 0.0
    %993 = vmatpush1.xpose.msra.mxu0 0.0
    %994 = vmatprep.subr.mxu0 0.0
    %995 = vmatpush1.xpose.msra.mxu0 0.0
    %996 = vmatprep.subr.mxu0 0.0
    %997 = vmatpush1.xpose.msra.mxu0 0.0
    %998 = vmatprep.subr.mxu0 0.0
    %999 = vmatpush1.xpose.msra.mxu0 0.0
    %1000 = vmatprep.subr.mxu0 0.0
    %1001 = vmatpush1.xpose.msra.mxu0 0.0
    %1002 = vmatprep.subr.mxu0 0.0
    %1003 = vmatpush1.xpose.msra.mxu0 0.0
    %1004 = vmatprep.subr.mxu0 0.0
    %1005 = vmatpush1.xpose.msra.mxu0 0.0
    %1006 = vmatprep.subr.mxu0 0.0
    %1007 = vmatpush1.xpose.msra.mxu0 0.0
    %1008 = vmatprep.subr.mxu0 0.0
    %1009 = vmatpush1.xpose.msra.mxu0 0.0
    %1010 = vmatprep.subr.mxu0 0.0
    %1011 = vmatpush1.xpose.msra.mxu0 0.0
    %1012 = vmatprep.subr.mxu0 0.0
    %1013 = vmatpush1.xpose.msra.mxu0 0.0
    %1014 = vmatprep.subr.mxu0 0.0
    %1015 = vmatpush1.xpose.msra.mxu0 0.0
    %1016 = vmatprep.subr.mxu0 0.0
    %1017 = vmatpush1.xpose.msra.mxu0 0.0
    %1018 = vmatprep.subr.mxu0 0.0
    %1019 = vmatpush1.xpose.msra.mxu0 0.0
    %1020 = vmatprep.subr.mxu0 0.0
    %1021 = vmatpush1.xpose.msra.mxu0 0.0
    %1022 = vmatprep.subr.mxu0 0.0
    %1023 = vmatpush1.xpose.msra.mxu0 0.0
    %1024 = vmatprep.mubr.f32.mxu0 0.0
    %1025 = vmatmul.mubr.f32.gmra.mrb[0].mxu0 %v955
    %v1026 = vpop.f32.mrb[0].mxu0
    %v1027 = vadd.f32 %v721, %v1026
    %v1028 = vpop.f32.mrb[0].mxu0
    %1029 = vdwg.mxu0
    %v1031 = vsel %vm125, %v488, 0
    %v1034 = vsel %vm125, %v714, 0
    %1036 = vmatprep.subr.mxu0 0.0
    %1037 = vmatpush1.xpose.msra.mxu0 %v1034
    %1038 = vmatprep.subr.mxu0 0.0
    %1039 = vmatpush1.xpose.msra.mxu0 0.0
    %1040 = vmatprep.subr.mxu0 0.0
    %1041 = vmatpush1.xpose.msra.mxu0 0.0
    %1042 = vmatprep.subr.mxu0 0.0
    %1043 = vmatpush1.xpose.msra.mxu0 0.0
    %1044 = vmatprep.subr.mxu0 0.0
    %1045 = vmatpush1.xpose.msra.mxu0 0.0
    %1046 = vmatprep.subr.mxu0 0.0
    %1047 = vmatpush1.xpose.msra.mxu0 0.0
    %1048 = vmatprep.subr.mxu0 0.0
    %1049 = vmatpush1.xpose.msra.mxu0 0.0
    %1050 = vmatprep.subr.mxu0 0.0
    %1051 = vmatpush1.xpose.msra.mxu0 0.0
    %1052 = vmatprep.subr.mxu0 0.0
    %1053 = vmatpush1.xpose.msra.mxu0 0.0
    %1054 = vmatprep.subr.mxu0 0.0
    %1055 = vmatpush1.xpose.msra.mxu0 0.0
    %1056 = vmatprep.subr.mxu0 0.0
    %1057 = vmatpush1.xpose.msra.mxu0 0.0
    %1058 = vmatprep.subr.mxu0 0.0
    %1059 = vmatpush1.xpose.msra.mxu0 0.0
    %1060 = vmatprep.subr.mxu0 0.0
    %1061 = vmatpush1.xpose.msra.mxu0 0.0
    %1062 = vmatprep.subr.mxu0 0.0
    %1063 = vmatpush1.xpose.msra.mxu0 0.0
    %1064 = vmatprep.subr.mxu0 0.0
    %1065 = vmatpush1.xpose.msra.mxu0 0.0
    %1066 = vmatprep.subr.mxu0 0.0
    %1067 = vmatpush1.xpose.msra.mxu0 0.0
    %1068 = vmatprep.subr.mxu0 0.0
    %1069 = vmatpush1.xpose.msra.mxu0 0.0
    %1070 = vmatprep.subr.mxu0 0.0
    %1071 = vmatpush1.xpose.msra.mxu0 0.0
    %1072 = vmatprep.subr.mxu0 0.0
    %1073 = vmatpush1.xpose.msra.mxu0 0.0
    %1074 = vmatprep.subr.mxu0 0.0
    %1075 = vmatpush1.xpose.msra.mxu0 0.0
    %1076 = vmatprep.subr.mxu0 0.0
    %1077 = vmatpush1.xpose.msra.mxu0 0.0
    %1078 = vmatprep.subr.mxu0 0.0
    %1079 = vmatpush1.xpose.msra.mxu0 0.0
    %1080 = vmatprep.subr.mxu0 0.0
    %1081 = vmatpush1.xpose.msra.mxu0 0.0
    %1082 = vmatprep.subr.mxu0 0.0
    %1083 = vmatpush1.xpose.msra.mxu0 0.0
    %1084 = vmatprep.subr.mxu0 0.0
    %1085 = vmatpush1.xpose.msra.mxu0 0.0
    %1086 = vmatprep.subr.mxu0 0.0
    %1087 = vmatpush1.xpose.msra.mxu0 0.0
    %1088 = vmatprep.subr.mxu0 0.0
    %1089 = vmatpush1.xpose.msra.mxu0 0.0
    %1090 = vmatprep.subr.mxu0 0.0
    %1091 = vmatpush1.xpose.msra.mxu0 0.0
    %1092 = vmatprep.subr.mxu0 0.0
    %1093 = vmatpush1.xpose.msra.mxu0 0.0
    %1094 = vmatprep.subr.mxu0 0.0
    %1095 = vmatpush1.xpose.msra.mxu0 0.0
    %1096 = vmatprep.subr.mxu0 0.0
    %1097 = vmatpush1.xpose.msra.mxu0 0.0
    %1098 = vmatprep.subr.mxu0 0.0
    %1099 = vmatpush1.xpose.msra.mxu0 0.0
    %1100 = vmatprep.mubr.f32.mxu0 0.0
    %1101 = vmatmul.mubr.f32.gmra.mrb[0].mxu0 %v1031
    %v1102 = vpop.f32.mrb[0].mxu0
    %v1103 = vadd.f32 %v722, %v1102
    %v1104 = vpop.f32.mrb[0].mxu0
    %1105 = vdwg.mxu0
    %v1107 = vsel %vm125, %v561, 0
    %v1110 = vsel %vm125, %v715, 0
    %1112 = vmatprep.subr.mxu0 0.0
    %1113 = vmatpush1.xpose.msra.mxu0 %v1110
    %1114 = vmatprep.subr.mxu0 0.0
    %1115 = vmatpush1.xpose.msra.mxu0 0.0
    %1116 = vmatprep.subr.mxu0 0.0
    %1117 = vmatpush1.xpose.msra.mxu0 0.0
    %1118 = vmatprep.subr.mxu0 0.0
    %1119 = vmatpush1.xpose.msra.mxu0 0.0
    %1120 = vmatprep.subr.mxu0 0.0
    %1121 = vmatpush1.xpose.msra.mxu0 0.0
    %1122 = vmatprep.subr.mxu0 0.0
    %1123 = vmatpush1.xpose.msra.mxu0 0.0
    %1124 = vmatprep.subr.mxu0 0.0
    %1125 = vmatpush1.xpose.msra.mxu0 0.0
    %1126 = vmatprep.subr.mxu0 0.0
    %1127 = vmatpush1.xpose.msra.mxu0 0.0
    %1128 = vmatprep.subr.mxu0 0.0
    %1129 = vmatpush1.xpose.msra.mxu0 0.0
    %1130 = vmatprep.subr.mxu0 0.0
    %1131 = vmatpush1.xpose.msra.mxu0 0.0
    %1132 = vmatprep.subr.mxu0 0.0
    %1133 = vmatpush1.xpose.msra.mxu0 0.0
    %1134 = vmatprep.subr.mxu0 0.0
    %1135 = vmatpush1.xpose.msra.mxu0 0.0
    %1136 = vmatprep.subr.mxu0 0.0
    %1137 = vmatpush1.xpose.msra.mxu0 0.0
    %1138 = vmatprep.subr.mxu0 0.0
    %1139 = vmatpush1.xpose.msra.mxu0 0.0
    %1140 = vmatprep.subr.mxu0 0.0
    %1141 = vmatpush1.xpose.msra.mxu0 0.0
    %1142 = vmatprep.subr.mxu0 0.0
    %1143 = vmatpush1.xpose.msra.mxu0 0.0
    %1144 = vmatprep.subr.mxu0 0.0
    %1145 = vmatpush1.xpose.msra.mxu0 0.0
    %1146 = vmatprep.subr.mxu0 0.0
    %1147 = vmatpush1.xpose.msra.mxu0 0.0
    %1148 = vmatprep.subr.mxu0 0.0
    %1149 = vmatpush1.xpose.msra.mxu0 0.0
    %1150 = vmatprep.subr.mxu0 0.0
    %1151 = vmatpush1.xpose.msra.mxu0 0.0
    %1152 = vmatprep.subr.mxu0 0.0
    %1153 = vmatpush1.xpose.msra.mxu0 0.0
    %1154 = vmatprep.subr.mxu0 0.0
    %1155 = vmatpush1.xpose.msra.mxu0 0.0
    %1156 = vmatprep.subr.mxu0 0.0
    %1157 = vmatpush1.xpose.msra.mxu0 0.0
    %1158 = vmatprep.subr.mxu0 0.0
    %1159 = vmatpush1.xpose.msra.mxu0 0.0
    %1160 = vmatprep.subr.mxu0 0.0
    %1161 = vmatpush1.xpose.msra.mxu0 0.0
    %1162 = vmatprep.subr.mxu0 0.0
    %1163 = vmatpush1.xpose.msra.mxu0 0.0
    %1164 = vmatprep.subr.mxu0 0.0
    %1165 = vmatpush1.xpose.msra.mxu0 0.0
    %1166 = vmatprep.subr.mxu0 0.0
    %1167 = vmatpush1.xpose.msra.mxu0 0.0
    %1168 = vmatprep.subr.mxu0 0.0
    %1169 = vmatpush1.xpose.msra.mxu0 0.0
    %1170 = vmatprep.subr.mxu0 0.0
    %1171 = vmatpush1.xpose.msra.mxu0 0.0
    %1172 = vmatprep.subr.mxu0 0.0
    %1173 = vmatpush1.xpose.msra.mxu0 0.0
    %1174 = vmatprep.subr.mxu0 0.0
    %1175 = vmatpush1.xpose.msra.mxu0 0.0
    %1176 = vmatprep.mubr.f32.mxu0 0.0
    %1177 = vmatmul.mubr.f32.gmra.mrb[0].mxu0 %v1107
    %v1178 = vpop.f32.mrb[0].mxu0
    %v1179 = vadd.f32 %v723, %v1178
    %v1180 = vpop.f32.mrb[0].mxu0
    %1181 = vdwg.mxu0
    %v1183 = vsel %vm125, %v634, 0
    %v1186 = vsel %vm125, %v716, 0
    %1188 = vmatprep.subr.mxu0 0.0
    %1189 = vmatpush1.xpose.msra.mxu0 %v1186
    %1190 = vmatprep.subr.mxu0 0.0
    %1191 = vmatpush1.xpose.msra.mxu0 0.0
    %1192 = vmatprep.subr.mxu0 0.0
    %1193 = vmatpush1.xpose.msra.mxu0 0.0
    %1194 = vmatprep.subr.mxu0 0.0
    %1195 = vmatpush1.xpose.msra.mxu0 0.0
    %1196 = vmatprep.subr.mxu0 0.0
    %1197 = vmatpush1.xpose.msra.mxu0 0.0
    %1198 = vmatprep.subr.mxu0 0.0
    %1199 = vmatpush1.xpose.msra.mxu0 0.0
    %1200 = vmatprep.subr.mxu0 0.0
    %1201 = vmatpush1.xpose.msra.mxu0 0.0
    %1202 = vmatprep.subr.mxu0 0.0
    %1203 = vmatpush1.xpose.msra.mxu0 0.0
    %1204 = vmatprep.subr.mxu0 0.0
    %1205 = vmatpush1.xpose.msra.mxu0 0.0
    %1206 = vmatprep.subr.mxu0 0.0
    %1207 = vmatpush1.xpose.msra.mxu0 0.0
    %1208 = vmatprep.subr.mxu0 0.0
    %1209 = vmatpush1.xpose.msra.mxu0 0.0
    %1210 = vmatprep.subr.mxu0 0.0
    %1211 = vmatpush1.xpose.msra.mxu0 0.0
    %1212 = vmatprep.subr.mxu0 0.0
    %1213 = vmatpush1.xpose.msra.mxu0 0.0
    %1214 = vmatprep.subr.mxu0 0.0
    %1215 = vmatpush1.xpose.msra.mxu0 0.0
    %1216 = vmatprep.subr.mxu0 0.0
    %1217 = vmatpush1.xpose.msra.mxu0 0.0
    %1218 = vmatprep.subr.mxu0 0.0
    %1219 = vmatpush1.xpose.msra.mxu0 0.0
    %1220 = vmatprep.subr.mxu0 0.0
    %1221 = vmatpush1.xpose.msra.mxu0 0.0
    %1222 = vmatprep.subr.mxu0 0.0
    %1223 = vmatpush1.xpose.msra.mxu0 0.0
    %1224 = vmatprep.subr.mxu0 0.0
    %1225 = vmatpush1.xpose.msra.mxu0 0.0
    %1226 = vmatprep.subr.mxu0 0.0
    %1227 = vmatpush1.xpose.msra.mxu0 0.0
    %1228 = vmatprep.subr.mxu0 0.0
    %1229 = vmatpush1.xpose.msra.mxu0 0.0
    %1230 = vmatprep.subr.mxu0 0.0
    %1231 = vmatpush1.xpose.msra.mxu0 0.0
    %1232 = vmatprep.subr.mxu0 0.0
    %1233 = vmatpush1.xpose.msra.mxu0 0.0
    %1234 = vmatprep.subr.mxu0 0.0
    %1235 = vmatpush1.xpose.msra.mxu0 0.0
    %1236 = vmatprep.subr.mxu0 0.0
    %1237 = vmatpush1.xpose.msra.mxu0 0.0
    %1238 = vmatprep.subr.mxu0 0.0
    %1239 = vmatpush1.xpose.msra.mxu0 0.0
    %1240 = vmatprep.subr.mxu0 0.0
    %1241 = vmatpush1.xpose.msra.mxu0 0.0
    %1242 = vmatprep.subr.mxu0 0.0
    %1243 = vmatpush1.xpose.msra.mxu0 0.0
    %1244 = vmatprep.subr.mxu0 0.0
    %1245 = vmatpush1.xpose.msra.mxu0 0.0
    %1246 = vmatprep.subr.mxu0 0.0
    %1247 = vmatpush1.xpose.msra.mxu0 0.0
    %1248 = vmatprep.subr.mxu0 0.0
    %1249 = vmatpush1.xpose.msra.mxu0 0.0
    %1250 = vmatprep.subr.mxu0 0.0
    %1251 = vmatpush1.xpose.msra.mxu0 0.0
    %1252 = vmatprep.mubr.f32.mxu0 0.0
    %1253 = vmatmul.mubr.f32.gmra.mrb[0].mxu0 %v1183
    %v1254 = vpop.f32.mrb[0].mxu0
    %v1255 = vadd.f32 %v724, %v1254
    %v1256 = vpop.f32.mrb[0].mxu0
    %1257 = vdwg.mxu0
    %v1259 = vsel %vm125, %v707, 0
    %v1262 = vsel %vm125, %v717, 0
    %1264 = vmatprep.subr.mxu0 0.0
    %1265 = vmatpush1.xpose.msra.mxu0 %v1262
    %1266 = vmatprep.subr.mxu0 0.0
    %1267 = vmatpush1.xpose.msra.mxu0 0.0
    %1268 = vmatprep.subr.mxu0 0.0
    %1269 = vmatpush1.xpose.msra.mxu0 0.0
    %1270 = vmatprep.subr.mxu0 0.0
    %1271 = vmatpush1.xpose.msra.mxu0 0.0
    %1272 = vmatprep.subr.mxu0 0.0
    %1273 = vmatpush1.xpose.msra.mxu0 0.0
    %1274 = vmatprep.subr.mxu0 0.0
    %1275 = vmatpush1.xpose.msra.mxu0 0.0
    %1276 = vmatprep.subr.mxu0 0.0
    %1277 = vmatpush1.xpose.msra.mxu0 0.0
    %1278 = vmatprep.subr.mxu0 0.0
    %1279 = vmatpush1.xpose.msra.mxu0 0.0
    %1280 = vmatprep.subr.mxu0 0.0
    %1281 = vmatpush1.xpose.msra.mxu0 0.0
    %1282 = vmatprep.subr.mxu0 0.0
    %1283 = vmatpush1.xpose.msra.mxu0 0.0
    %1284 = vmatprep.subr.mxu0 0.0
    %1285 = vmatpush1.xpose.msra.mxu0 0.0
    %1286 = vmatprep.subr.mxu0 0.0
    %1287 = vmatpush1.xpose.msra.mxu0 0.0
    %1288 = vmatprep.subr.mxu0 0.0
    %1289 = vmatpush1.xpose.msra.mxu0 0.0
    %1290 = vmatprep.subr.mxu0 0.0
    %1291 = vmatpush1.xpose.msra.mxu0 0.0
    %1292 = vmatprep.subr.mxu0 0.0
    %1293 = vmatpush1.xpose.msra.mxu0 0.0
    %1294 = vmatprep.subr.mxu0 0.0
    %1295 = vmatpush1.xpose.msra.mxu0 0.0
    %1296 = vmatprep.subr.mxu0 0.0
    %1297 = vmatpush1.xpose.msra.mxu0 0.0
    %1298 = vmatprep.subr.mxu0 0.0
    %1299 = vmatpush1.xpose.msra.mxu0 0.0
    %1300 = vmatprep.subr.mxu0 0.0
    %1301 = vmatpush1.xpose.msra.mxu0 0.0
    %1302 = vmatprep.subr.mxu0 0.0
    %1303 = vmatpush1.xpose.msra.mxu0 0.0
    %1304 = vmatprep.subr.mxu0 0.0
    %1305 = vmatpush1.xpose.msra.mxu0 0.0
    %1306 = vmatprep.subr.mxu0 0.0
    %1307 = vmatpush1.xpose.msra.mxu0 0.0
    %1308 = vmatprep.subr.mxu0 0.0
    %1309 = vmatpush1.xpose.msra.mxu0 0.0
    %1310 = vmatprep.subr.mxu0 0.0
    %1311 = vmatpush1.xpose.msra.mxu0 0.0
    %1312 = vmatprep.subr.mxu0 0.0
    %1313 = vmatpush1.xpose.msra.mxu0 0.0
    %1314 = vmatprep.subr.mxu0 0.0
    %1315 = vmatpush1.xpose.msra.mxu0 0.0
    %1316 = vmatprep.subr.mxu0 0.0
    %1317 = vmatpush1.xpose.msra.mxu0 0.0
    %1318 = vmatprep.subr.mxu0 0.0
    %1319 = vmatpush1.xpose.msra.mxu0 0.0
    %1320 = vmatprep.subr.mxu0 0.0
    %1321 = vmatpush1.xpose.msra.mxu0 0.0
    %1322 = vmatprep.subr.mxu0 0.0
    %1323 = vmatpush1.xpose.msra.mxu0 0.0
    %1324 = vmatprep.subr.mxu0 0.0
    %1325 = vmatpush1.xpose.msra.mxu0 0.0
    %1326 = vmatprep.subr.mxu0 0.0
    %1327 = vmatpush1.xpose.msra.mxu0 0.0
    %1328 = vmatprep.mubr.f32.mxu0 0.0
    %1329 = vmatmul.mubr.f32.gmra.mrb[0].mxu0 %v1259
    %v1330 = vpop.f32.mrb[0].mxu0
    %v1331 = vadd.f32 %v725, %v1330
    %v1332 = vpop.f32.mrb[0].mxu0
    %1333 = vdwg.mxu0
    %v1334 = vsel %vm125, %v799, -inf
    %1335 = vmax.xlane.f32.xlu0 %v1334
    %v1336 = vpop.xlane.xlu0 %1335
    %v1337 = vsel %vm125, %v875, -inf
    %1338 = vmax.xlane.f32.xlu0 %v1337
    %v1339 = vpop.xlane.xlu0 %1338
    %v1340 = vsel %vm125, %v951, -inf
    %1341 = vmax.xlane.f32.xlu0 %v1340
    %v1342 = vpop.xlane.xlu0 %1341
    %v1343 = vsel %vm125, %v1027, -inf
    %1344 = vmax.xlane.f32.xlu0 %v1343
    %v1345 = vpop.xlane.xlu0 %1344
    %v1346 = vsel %vm125, %v1103, -inf
    %1347 = vmax.xlane.f32.xlu0 %v1346
    %v1348 = vpop.xlane.xlu0 %1347
    %v1349 = vsel %vm125, %v1179, -inf
    %1350 = vmax.xlane.f32.xlu0 %v1349
    %v1351 = vpop.xlane.xlu0 %1350
    %v1352 = vsel %vm125, %v1255, -inf
    %1353 = vmax.xlane.f32.xlu0 %v1352
    %v1354 = vpop.xlane.xlu0 %1353
    %v1355 = vsel %vm125, %v1331, -inf
    %1356 = vmax.xlane.f32.xlu0 %v1355
    %v1357 = vpop.xlane.xlu0 %1356
    %v1358 = vsub.f32 %v799, %v1336
    %v1359 = vsub.f32 %v875, %v1339
    %v1360 = vsub.f32 %v951, %v1342
    %v1361 = vsub.f32 %v1027, %v1345
    %v1362 = vsub.f32 %v1103, %v1348
    %v1363 = vsub.f32 %v1179, %v1351
    %v1364 = vsub.f32 %v1255, %v1354
    %v1365 = vsub.f32 %v1331, %v1357
    %v1366 = vmul.f32 %v1358, 1.442695
    %v1367 = vpow.pop %v1366
    %v1368 = vmul.f32 %v1359, 1.442695
    %v1369 = vpow.pop %v1368
    %v1370 = vmul.f32 %v1360, 1.442695
    %v1371 = vpow.pop %v1370
    %v1372 = vmul.f32 %v1361, 1.442695
    %v1373 = vpow.pop %v1372
    %v1374 = vmul.f32 %v1362, 1.442695
    %v1375 = vpow.pop %v1374
    %v1376 = vmul.f32 %v1363, 1.442695
    %v1377 = vpow.pop %v1376
    %v1378 = vmul.f32 %v1364, 1.442695
    %v1379 = vpow.pop %v1378
    %v1380 = vmul.f32 %v1365, 1.442695
    %v1381 = vpow.pop %v1380
    %v1382 = vsel %vm125, %v1367, 0.0
    %1383 = vadd.xlane.f32.xlu0 %v1382
    %v1384 = vpop.xlane.xlu0 %1383
    %v1385 = vsel %vm125, %v1369, 0.0
    %1386 = vadd.xlane.f32.xlu0 %v1385
    %v1387 = vpop.xlane.xlu0 %1386
    %v1388 = vsel %vm125, %v1371, 0.0
    %1389 = vadd.xlane.f32.xlu0 %v1388
    %v1390 = vpop.xlane.xlu0 %1389
    %v1391 = vsel %vm125, %v1373, 0.0
    %1392 = vadd.xlane.f32.xlu0 %v1391
    %v1393 = vpop.xlane.xlu0 %1392
    %v1394 = vsel %vm125, %v1375, 0.0
    %1395 = vadd.xlane.f32.xlu0 %v1394
    %v1396 = vpop.xlane.xlu0 %1395
    %v1397 = vsel %vm125, %v1377, 0.0
    %1398 = vadd.xlane.f32.xlu0 %v1397
    %v1399 = vpop.xlane.xlu0 %1398
    %v1400 = vsel %vm125, %v1379, 0.0
    %1401 = vadd.xlane.f32.xlu0 %v1400
    %v1402 = vpop.xlane.xlu0 %1401
    %v1403 = vsel %vm125, %v1381, 0.0
    %1404 = vadd.xlane.f32.xlu0 %v1403
    %v1405 = vpop.xlane.xlu0 %1404
    %v1406 = vrcp.pop %v1384
    %v1407 = vrcp.pop %v1387
    %v1408 = vrcp.pop %v1390
    %v1409 = vrcp.pop %v1393
    %v1410 = vrcp.pop %v1396
    %v1411 = vrcp.pop %v1399
    %v1412 = vrcp.pop %v1402
    %v1413 = vrcp.pop %v1405
    %v1414 = vmul.f32 %v1367, %v1406
    %v1415 = vmul.f32 %v1369, %v1407
    %v1416 = vmul.f32 %v1371, %v1408
    %v1417 = vmul.f32 %v1373, %v1409
    %v1418 = vmul.f32 %v1375, %v1410
    %v1419 = vmul.f32 %v1377, %v1411
    %v1420 = vmul.f32 %v1379, %v1412
    %v1421 = vmul.f32 %v1381, %v1413
    %v1422 = vld [vmem:[#allocation7] sm:$0xff]
    %v1423 = vld [vmem:[#allocation7 + $0x8] sm:$0xff]
    %v1424 = vld [vmem:[#allocation7 + $0x10] sm:$0xff]
    %v1425 = vld [vmem:[#allocation7 + $0x18] sm:$0xff]
    %v1426 = vld [vmem:[#allocation7 + $0x20] sm:$0xff]
    %v1427 = vld [vmem:[#allocation7 + $0x28] sm:$0xff]
    %v1428 = vld [vmem:[#allocation7 + $0x30] sm:$0xff]
    %v1429 = vld [vmem:[#allocation7 + $0x38] sm:$0xff]
    %v1431 = vsel %vm125, %v1414, 0
    %1433 = vmatprep.subr.mxu0 0.0
    %1434 = vmatpush1.msra.mxu0 %v1422
    %1435 = vmatprep.subr.mxu0 0.0
    %1436 = vmatpush1.msra.mxu0 0.0
    %1437 = vmatprep.subr.mxu0 0.0
    %1438 = vmatpush1.msra.mxu0 0.0
    %1439 = vmatprep.subr.mxu0 0.0
    %1440 = vmatpush1.msra.mxu0 0.0
    %1441 = vmatprep.subr.mxu0 0.0
    %1442 = vmatpush1.msra.mxu0 0.0
    %1443 = vmatprep.subr.mxu0 0.0
    %1444 = vmatpush1.msra.mxu0 0.0
    %1445 = vmatprep.subr.mxu0 0.0
    %1446 = vmatpush1.msra.mxu0 0.0
    %1447 = vmatprep.subr.mxu0 0.0
    %1448 = vmatpush1.msra.mxu0 0.0
    %1449 = vmatprep.subr.mxu0 0.0
    %1450 = vmatpush1.msra.mxu0 0.0
    %1451 = vmatprep.subr.mxu0 0.0
    %1452 = vmatpush1.msra.mxu0 0.0
    %1453 = vmatprep.subr.mxu0 0.0
    %1454 = vmatpush1.msra.mxu0 0.0
    %1455 = vmatprep.subr.mxu0 0.0
    %1456 = vmatpush1.msra.mxu0 0.0
    %1457 = vmatprep.subr.mxu0 0.0
    %1458 = vmatpush1.msra.mxu0 0.0
    %1459 = vmatprep.subr.mxu0 0.0
    %1460 = vmatpush1.msra.mxu0 0.0
    %1461 = vmatprep.subr.mxu0 0.0
    %1462 = vmatpush1.msra.mxu0 0.0
    %1463 = vmatprep.subr.mxu0 0.0
    %1464 = vmatpush1.msra.mxu0 0.0
    %1465 = vmatprep.subr.mxu0 0.0
    %1466 = vmatpush1.msra.mxu0 0.0
    %1467 = vmatprep.subr.mxu0 0.0
    %1468 = vmatpush1.msra.mxu0 0.0
    %1469 = vmatprep.subr.mxu0 0.0
    %1470 = vmatpush1.msra.mxu0 0.0
    %1471 = vmatprep.subr.mxu0 0.0
    %1472 = vmatpush1.msra.mxu0 0.0
    %1473 = vmatprep.subr.mxu0 0.0
    %1474 = vmatpush1.msra.mxu0 0.0
    %1475 = vmatprep.subr.mxu0 0.0
    %1476 = vmatpush1.msra.mxu0 0.0
    %1477 = vmatprep.subr.mxu0 0.0
    %1478 = vmatpush1.msra.mxu0 0.0
    %1479 = vmatprep.subr.mxu0 0.0
    %1480 = vmatpush1.msra.mxu0 0.0
    %1481 = vmatprep.subr.mxu0 0.0
    %1482 = vmatpush1.msra.mxu0 0.0
    %1483 = vmatprep.subr.mxu0 0.0
    %1484 = vmatpush1.msra.mxu0 0.0
    %1485 = vmatprep.subr.mxu0 0.0
    %1486 = vmatpush1.msra.mxu0 0.0
    %1487 = vmatprep.subr.mxu0 0.0
    %1488 = vmatpush1.msra.mxu0 0.0
    %1489 = vmatprep.subr.mxu0 0.0
    %1490 = vmatpush1.msra.mxu0 0.0
    %1491 = vmatprep.subr.mxu0 0.0
    %1492 = vmatpush1.msra.mxu0 0.0
    %1493 = vmatprep.subr.mxu0 0.0
    %1494 = vmatpush1.msra.mxu0 0.0
    %1495 = vmatprep.subr.mxu0 0.0
    %1496 = vmatpush1.msra.mxu0 0.0
    %1497 = vmatprep.mubr.f32.mxu0 0.0
    %1498 = vmatmul.mubr.f32.gmra.mrb[0].mxu0 %v1431
    %v1499 = vpop.f32.mrb[0].mxu0
    %v1500 = vadd.f32 0.0, %v1499
    %v1501 = vpop.f32.mrb[0].mxu0
    %1502 = vdwg.mxu0
    %v1504 = vsel %vm125, %v1415, 0
    %1506 = vmatprep.subr.mxu0 0.0
    %1507 = vmatpush1.msra.mxu0 %v1423
    %1508 = vmatprep.subr.mxu0 0.0
    %1509 = vmatpush1.msra.mxu0 0.0
    %1510 = vmatprep.subr.mxu0 0.0
    %1511 = vmatpush1.msra.mxu0 0.0
    %1512 = vmatprep.subr.mxu0 0.0
    %1513 = vmatpush1.msra.mxu0 0.0
    %1514 = vmatprep.subr.mxu0 0.0
    %1515 = vmatpush1.msra.mxu0 0.0
    %1516 = vmatprep.subr.mxu0 0.0
    %1517 = vmatpush1.msra.mxu0 0.0
    %1518 = vmatprep.subr.mxu0 0.0
    %1519 = vmatpush1.msra.mxu0 0.0
    %1520 = vmatprep.subr.mxu0 0.0
    %1521 = vmatpush1.msra.mxu0 0.0
    %1522 = vmatprep.subr.mxu0 0.0
    %1523 = vmatpush1.msra.mxu0 0.0
    %1524 = vmatprep.subr.mxu0 0.0
    %1525 = vmatpush1.msra.mxu0 0.0
    %1526 = vmatprep.subr.mxu0 0.0
    %1527 = vmatpush1.msra.mxu0 0.0
    %1528 = vmatprep.subr.mxu0 0.0
    %1529 = vmatpush1.msra.mxu0 0.0
    %1530 = vmatprep.subr.mxu0 0.0
    %1531 = vmatpush1.msra.mxu0 0.0
    %1532 = vmatprep.subr.mxu0 0.0
    %1533 = vmatpush1.msra.mxu0 0.0
    %1534 = vmatprep.subr.mxu0 0.0
    %1535 = vmatpush1.msra.mxu0 0.0
    %1536 = vmatprep.subr.mxu0 0.0
    %1537 = vmatpush1.msra.mxu0 0.0
    %1538 = vmatprep.subr.mxu0 0.0
    %1539 = vmatpush1.msra.mxu0 0.0
    %1540 = vmatprep.subr.mxu0 0.0
    %1541 = vmatpush1.msra.mxu0 0.0
    %1542 = vmatprep.subr.mxu0 0.0
    %1543 = vmatpush1.msra.mxu0 0.0
    %1544 = vmatprep.subr.mxu0 0.0
    %1545 = vmatpush1.msra.mxu0 0.0
    %1546 = vmatprep.subr.mxu0 0.0
    %1547 = vmatpush1.msra.mxu0 0.0
    %1548 = vmatprep.subr.mxu0 0.0
    %1549 = vmatpush1.msra.mxu0 0.0
    %1550 = vmatprep.subr.mxu0 0.0
    %1551 = vmatpush1.msra.mxu0 0.0
    %1552 = vmatprep.subr.mxu0 0.0
    %1553 = vmatpush1.msra.mxu0 0.0
    %1554 = vmatprep.subr.mxu0 0.0
    %1555 = vmatpush1.msra.mxu0 0.0
    %1556 = vmatprep.subr.mxu0 0.0
    %1557 = vmatpush1.msra.mxu0 0.0
    %1558 = vmatprep.subr.mxu0 0.0
    %1559 = vmatpush1.msra.mxu0 0.0
    %1560 = vmatprep.subr.mxu0 0.0
    %1561 = vmatpush1.msra.mxu0 0.0
    %1562 = vmatprep.subr.mxu0 0.0
    %1563 = vmatpush1.msra.mxu0 0.0
    %1564 = vmatprep.subr.mxu0 0.0
    %1565 = vmatpush1.msra.mxu0 0.0
    %1566 = vmatprep.subr.mxu0 0.0
    %1567 = vmatpush1.msra.mxu0 0.0
    %1568 = vmatprep.subr.mxu0 0.0
    %1569 = vmatpush1.msra.mxu0 0.0
    %1570 = vmatprep.mubr.f32.mxu0 0.0
    %1571 = vmatmul.mubr.f32.gmra.mrb[0].mxu0 %v1504
    %v1572 = vpop.f32.mrb[0].mxu0
    %v1573 = vadd.f32 0.0, %v1572
    %v1574 = vpop.f32.mrb[0].mxu0
    %1575 = vdwg.mxu0
    %v1577 = vsel %vm125, %v1416, 0
    %1579 = vmatprep.subr.mxu0 0.0
    %1580 = vmatpush1.msra.mxu0 %v1424
    %1581 = vmatprep.subr.mxu0 0.0
    %1582 = vmatpush1.msra.mxu0 0.0
    %1583 = vmatprep.subr.mxu0 0.0
    %1584 = vmatpush1.msra.mxu0 0.0
    %1585 = vmatprep.subr.mxu0 0.0
    %1586 = vmatpush1.msra.mxu0 0.0
    %1587 = vmatprep.subr.mxu0 0.0
    %1588 = vmatpush1.msra.mxu0 0.0
    %1589 = vmatprep.subr.mxu0 0.0
    %1590 = vmatpush1.msra.mxu0 0.0
    %1591 = vmatprep.subr.mxu0 0.0
    %1592 = vmatpush1.msra.mxu0 0.0
    %1593 = vmatprep.subr.mxu0 0.0
    %1594 = vmatpush1.msra.mxu0 0.0
    %1595 = vmatprep.subr.mxu0 0.0
    %1596 = vmatpush1.msra.mxu0 0.0
    %1597 = vmatprep.subr.mxu0 0.0
    %1598 = vmatpush1.msra.mxu0 0.0
    %1599 = vmatprep.subr.mxu0 0.0
    %1600 = vmatpush1.msra.mxu0 0.0
    %1601 = vmatprep.subr.mxu0 0.0
    %1602 = vmatpush1.msra.mxu0 0.0
    %1603 = vmatprep.subr.mxu0 0.0
    %1604 = vmatpush1.msra.mxu0 0.0
    %1605 = vmatprep.subr.mxu0 0.0
    %1606 = vmatpush1.msra.mxu0 0.0
    %1607 = vmatprep.subr.mxu0 0.0
    %1608 = vmatpush1.msra.mxu0 0.0
    %1609 = vmatprep.subr.mxu0 0.0
    %1610 = vmatpush1.msra.mxu0 0.0
    %1611 = vmatprep.subr.mxu0 0.0
    %1612 = vmatpush1.msra.mxu0 0.0
    %1613 = vmatprep.subr.mxu0 0.0
    %1614 = vmatpush1.msra.mxu0 0.0
    %1615 = vmatprep.subr.mxu0 0.0
    %1616 = vmatpush1.msra.mxu0 0.0
    %1617 = vmatprep.subr.mxu0 0.0
    %1618 = vmatpush1.msra.mxu0 0.0
    %1619 = vmatprep.subr.mxu0 0.0
    %1620 = vmatpush1.msra.mxu0 0.0
    %1621 = vmatprep.subr.mxu0 0.0
    %1622 = vmatpush1.msra.mxu0 0.0
    %1623 = vmatprep.subr.mxu0 0.0
    %1624 = vmatpush1.msra.mxu0 0.0
    %1625 = vmatprep.subr.mxu0 0.0
    %1626 = vmatpush1.msra.mxu0 0.0
    %1627 = vmatprep.subr.mxu0 0.0
    %1628 = vmatpush1.msra.mxu0 0.0
    %1629 = vmatprep.subr.mxu0 0.0
    %1630 = vmatpush1.msra.mxu0 0.0
    %1631 = vmatprep.subr.mxu0 0.0
    %1632 = vmatpush1.msra.mxu0 0.0
    %1633 = vmatprep.subr.mxu0 0.0
    %1634 = vmatpush1.msra.mxu0 0.0
    %1635 = vmatprep.subr.mxu0 0.0
    %1636 = vmatpush1.msra.mxu0 0.0
    %1637 = vmatprep.subr.mxu0 0.0
    %1638 = vmatpush1.msra.mxu0 0.0
    %1639 = vmatprep.subr.mxu0 0.0
    %1640 = vmatpush1.msra.mxu0 0.0
    %1641 = vmatprep.subr.mxu0 0.0
    %1642 = vmatpush1.msra.mxu0 0.0
    %1643 = vmatprep.mubr.f32.mxu0 0.0
    %1644 = vmatmul.mubr.f32.gmra.mrb[0].mxu0 %v1577
    %v1645 = vpop.f32.mrb[0].mxu0
    %v1646 = vadd.f32 0.0, %v1645
    %v1647 = vpop.f32.mrb[0].mxu0
    %1648 = vdwg.mxu0
    %v1650 = vsel %vm125, %v1417, 0
    %1652 = vmatprep.subr.mxu0 0.0
    %1653 = vmatpush1.msra.mxu0 %v1425
    %1654 = vmatprep.subr.mxu0 0.0
    %1655 = vmatpush1.msra.mxu0 0.0
    %1656 = vmatprep.subr.mxu0 0.0
    %1657 = vmatpush1.msra.mxu0 0.0
    %1658 = vmatprep.subr.mxu0 0.0
    %1659 = vmatpush1.msra.mxu0 0.0
    %1660 = vmatprep.subr.mxu0 0.0
    %1661 = vmatpush1.msra.mxu0 0.0
    %1662 = vmatprep.subr.mxu0 0.0
    %1663 = vmatpush1.msra.mxu0 0.0
    %1664 = vmatprep.subr.mxu0 0.0
    %1665 = vmatpush1.msra.mxu0 0.0
    %1666 = vmatprep.subr.mxu0 0.0
    %1667 = vmatpush1.msra.mxu0 0.0
    %1668 = vmatprep.subr.mxu0 0.0
    %1669 = vmatpush1.msra.mxu0 0.0
    %1670 = vmatprep.subr.mxu0 0.0
    %1671 = vmatpush1.msra.mxu0 0.0
    %1672 = vmatprep.subr.mxu0 0.0
    %1673 = vmatpush1.msra.mxu0 0.0
    %1674 = vmatprep.subr.mxu0 0.0
    %1675 = vmatpush1.msra.mxu0 0.0
    %1676 = vmatprep.subr.mxu0 0.0
    %1677 = vmatpush1.msra.mxu0 0.0
    %1678 = vmatprep.subr.mxu0 0.0
    %1679 = vmatpush1.msra.mxu0 0.0
    %1680 = vmatprep.subr.mxu0 0.0
    %1681 = vmatpush1.msra.mxu0 0.0
    %1682 = vmatprep.subr.mxu0 0.0
    %1683 = vmatpush1.msra.mxu0 0.0
    %1684 = vmatprep.subr.mxu0 0.0
    %1685 = vmatpush1.msra.mxu0 0.0
    %1686 = vmatprep.subr.mxu0 0.0
    %1687 = vmatpush1.msra.mxu0 0.0
    %1688 = vmatprep.subr.mxu0 0.0
    %1689 = vmatpush1.msra.mxu0 0.0
    %1690 = vmatprep.subr.mxu0 0.0
    %1691 = vmatpush1.msra.mxu0 0.0
    %1692 = vmatprep.subr.mxu0 0.0
    %1693 = vmatpush1.msra.mxu0 0.0
    %1694 = vmatprep.subr.mxu0 0.0
    %1695 = vmatpush1.msra.mxu0 0.0
    %1696 = vmatprep.subr.mxu0 0.0
    %1697 = vmatpush1.msra.mxu0 0.0
    %1698 = vmatprep.subr.mxu0 0.0
    %1699 = vmatpush1.msra.mxu0 0.0
    %1700 = vmatprep.subr.mxu0 0.0
    %1701 = vmatpush1.msra.mxu0 0.0
    %1702 = vmatprep.subr.mxu0 0.0
    %1703 = vmatpush1.msra.mxu0 0.0
    %1704 = vmatprep.subr.mxu0 0.0
    %1705 = vmatpush1.msra.mxu0 0.0
    %1706 = vmatprep.subr.mxu0 0.0
    %1707 = vmatpush1.msra.mxu0 0.0
    %1708 = vmatprep.subr.mxu0 0.0
    %1709 = vmatpush1.msra.mxu0 0.0
    %1710 = vmatprep.subr.mxu0 0.0
    %1711 = vmatpush1.msra.mxu0 0.0
    %1712 = vmatprep.subr.mxu0 0.0
    %1713 = vmatpush1.msra.mxu0 0.0
    %1714 = vmatprep.subr.mxu0 0.0
    %1715 = vmatpush1.msra.mxu0 0.0
    %1716 = vmatprep.mubr.f32.mxu0 0.0
    %1717 = vmatmul.mubr.f32.gmra.mrb[0].mxu0 %v1650
    %v1718 = vpop.f32.mrb[0].mxu0
    %v1719 = vadd.f32 0.0, %v1718
    %v1720 = vpop.f32.mrb[0].mxu0
    %1721 = vdwg.mxu0
    %v1723 = vsel %vm125, %v1418, 0
    %1725 = vmatprep.subr.mxu0 0.0
    %1726 = vmatpush1.msra.mxu0 %v1426
    %1727 = vmatprep.subr.mxu0 0.0
    %1728 = vmatpush1.msra.mxu0 0.0
    %1729 = vmatprep.subr.mxu0 0.0
    %1730 = vmatpush1.msra.mxu0 0.0
    %1731 = vmatprep.subr.mxu0 0.0
    %1732 = vmatpush1.msra.mxu0 0.0
    %1733 = vmatprep.subr.mxu0 0.0
    %1734 = vmatpush1.msra.mxu0 0.0
    %1735 = vmatprep.subr.mxu0 0.0
    %1736 = vmatpush1.msra.mxu0 0.0
    %1737 = vmatprep.subr.mxu0 0.0
    %1738 = vmatpush1.msra.mxu0 0.0
    %1739 = vmatprep.subr.mxu0 0.0
    %1740 = vmatpush1.msra.mxu0 0.0
    %1741 = vmatprep.subr.mxu0 0.0
    %1742 = vmatpush1.msra.mxu0 0.0
    %1743 = vmatprep.subr.mxu0 0.0
    %1744 = vmatpush1.msra.mxu0 0.0
    %1745 = vmatprep.subr.mxu0 0.0
    %1746 = vmatpush1.msra.mxu0 0.0
    %1747 = vmatprep.subr.mxu0 0.0
    %1748 = vmatpush1.msra.mxu0 0.0
    %1749 = vmatprep.subr.mxu0 0.0
    %1750 = vmatpush1.msra.mxu0 0.0
    %1751 = vmatprep.subr.mxu0 0.0
    %1752 = vmatpush1.msra.mxu0 0.0
    %1753 = vmatprep.subr.mxu0 0.0
    %1754 = vmatpush1.msra.mxu0 0.0
    %1755 = vmatprep.subr.mxu0 0.0
    %1756 = vmatpush1.msra.mxu0 0.0
    %1757 = vmatprep.subr.mxu0 0.0
    %1758 = vmatpush1.msra.mxu0 0.0
    %1759 = vmatprep.subr.mxu0 0.0
    %1760 = vmatpush1.msra.mxu0 0.0
    %1761 = vmatprep.subr.mxu0 0.0
    %1762 = vmatpush1.msra.mxu0 0.0
    %1763 = vmatprep.subr.mxu0 0.0
    %1764 = vmatpush1.msra.mxu0 0.0
    %1765 = vmatprep.subr.mxu0 0.0
    %1766 = vmatpush1.msra.mxu0 0.0
    %1767 = vmatprep.subr.mxu0 0.0
    %1768 = vmatpush1.msra.mxu0 0.0
    %1769 = vmatprep.subr.mxu0 0.0
    %1770 = vmatpush1.msra.mxu0 0.0
    %1771 = vmatprep.subr.mxu0 0.0
    %1772 = vmatpush1.msra.mxu0 0.0
    %1773 = vmatprep.subr.mxu0 0.0
    %1774 = vmatpush1.msra.mxu0 0.0
    %1775 = vmatprep.subr.mxu0 0.0
    %1776 = vmatpush1.msra.mxu0 0.0
    %1777 = vmatprep.subr.mxu0 0.0
    %1778 = vmatpush1.msra.mxu0 0.0
    %1779 = vmatprep.subr.mxu0 0.0
    %1780 = vmatpush1.msra.mxu0 0.0
    %1781 = vmatprep.subr.mxu0 0.0
    %1782 = vmatpush1.msra.mxu0 0.0
    %1783 = vmatprep.subr.mxu0 0.0
    %1784 = vmatpush1.msra.mxu0 0.0
    %1785 = vmatprep.subr.mxu0 0.0
    %1786 = vmatpush1.msra.mxu0 0.0
    %1787 = vmatprep.subr.mxu0 0.0
    %1788 = vmatpush1.msra.mxu0 0.0
    %1789 = vmatprep.mubr.f32.mxu0 0.0
    %1790 = vmatmul.mubr.f32.gmra.mrb[0].mxu0 %v1723
    %v1791 = vpop.f32.mrb[0].mxu0
    %v1792 = vadd.f32 0.0, %v1791
    %v1793 = vpop.f32.mrb[0].mxu0
    %1794 = vdwg.mxu0
    %v1796 = vsel %vm125, %v1419, 0
    %1798 = vmatprep.subr.mxu0 0.0
    %1799 = vmatpush1.msra.mxu0 %v1427
    %1800 = vmatprep.subr.mxu0 0.0
    %1801 = vmatpush1.msra.mxu0 0.0
    %1802 = vmatprep.subr.mxu0 0.0
    %1803 = vmatpush1.msra.mxu0 0.0
    %1804 = vmatprep.subr.mxu0 0.0
    %1805 = vmatpush1.msra.mxu0 0.0
    %1806 = vmatprep.subr.mxu0 0.0
    %1807 = vmatpush1.msra.mxu0 0.0
    %1808 = vmatprep.subr.mxu0 0.0
    %1809 = vmatpush1.msra.mxu0 0.0
    %1810 = vmatprep.subr.mxu0 0.0
    %1811 = vmatpush1.msra.mxu0 0.0
    %1812 = vmatprep.subr.mxu0 0.0
    %1813 = vmatpush1.msra.mxu0 0.0
    %1814 = vmatprep.subr.mxu0 0.0
    %1815 = vmatpush1.msra.mxu0 0.0
    %1816 = vmatprep.subr.mxu0 0.0
    %1817 = vmatpush1.msra.mxu0 0.0
    %1818 = vmatprep.subr.mxu0 0.0
    %1819 = vmatpush1.msra.mxu0 0.0
    %1820 = vmatprep.subr.mxu0 0.0
    %1821 = vmatpush1.msra.mxu0 0.0
    %1822 = vmatprep.subr.mxu0 0.0
    %1823 = vmatpush1.msra.mxu0 0.0
    %1824 = vmatprep.subr.mxu0 0.0
    %1825 = vmatpush1.msra.mxu0 0.0
    %1826 = vmatprep.subr.mxu0 0.0
    %1827 = vmatpush1.msra.mxu0 0.0
    %1828 = vmatprep.subr.mxu0 0.0
    %1829 = vmatpush1.msra.mxu0 0.0
    %1830 = vmatprep.subr.mxu0 0.0
    %1831 = vmatpush1.msra.mxu0 0.0
    %1832 = vmatprep.subr.mxu0 0.0
    %1833 = vmatpush1.msra.mxu0 0.0
    %1834 = vmatprep.subr.mxu0 0.0
    %1835 = vmatpush1.msra.mxu0 0.0
    %1836 = vmatprep.subr.mxu0 0.0
    %1837 = vmatpush1.msra.mxu0 0.0
    %1838 = vmatprep.subr.mxu0 0.0
    %1839 = vmatpush1.msra.mxu0 0.0
    %1840 = vmatprep.subr.mxu0 0.0
    %1841 = vmatpush1.msra.mxu0 0.0
    %1842 = vmatprep.subr.mxu0 0.0
    %1843 = vmatpush1.msra.mxu0 0.0
    %1844 = vmatprep.subr.mxu0 0.0
    %1845 = vmatpush1.msra.mxu0 0.0
    %1846 = vmatprep.subr.mxu0 0.0
    %1847 = vmatpush1.msra.mxu0 0.0
    %1848 = vmatprep.subr.mxu0 0.0
    %1849 = vmatpush1.msra.mxu0 0.0
    %1850 = vmatprep.subr.mxu0 0.0
    %1851 = vmatpush1.msra.mxu0 0.0
    %1852 = vmatprep.subr.mxu0 0.0
    %1853 = vmatpush1.msra.mxu0 0.0
    %1854 = vmatprep.subr.mxu0 0.0
    %1855 = vmatpush1.msra.mxu0 0.0
    %1856 = vmatprep.subr.mxu0 0.0
    %1857 = vmatpush1.msra.mxu0 0.0
    %1858 = vmatprep.subr.mxu0 0.0
    %1859 = vmatpush1.msra.mxu0 0.0
    %1860 = vmatprep.subr.mxu0 0.0
    %1861 = vmatpush1.msra.mxu0 0.0
    %1862 = vmatprep.mubr.f32.mxu0 0.0
    %1863 = vmatmul.mubr.f32.gmra.mrb[0].mxu0 %v1796
    %v1864 = vpop.f32.mrb[0].mxu0
    %v1865 = vadd.f32 0.0, %v1864
    %v1866 = vpop.f32.mrb[0].mxu0
    %1867 = vdwg.mxu0
    %v1869 = vsel %vm125, %v1420, 0
    %1871 = vmatprep.subr.mxu0 0.0
    %1872 = vmatpush1.msra.mxu0 %v1428
    %1873 = vmatprep.subr.mxu0 0.0
    %1874 = vmatpush1.msra.mxu0 0.0
    %1875 = vmatprep.subr.mxu0 0.0
    %1876 = vmatpush1.msra.mxu0 0.0
    %1877 = vmatprep.subr.mxu0 0.0
    %1878 = vmatpush1.msra.mxu0 0.0
    %1879 = vmatprep.subr.mxu0 0.0
    %1880 = vmatpush1.msra.mxu0 0.0
    %1881 = vmatprep.subr.mxu0 0.0
    %1882 = vmatpush1.msra.mxu0 0.0
    %1883 = vmatprep.subr.mxu0 0.0
    %1884 = vmatpush1.msra.mxu0 0.0
    %1885 = vmatprep.subr.mxu0 0.0
    %1886 = vmatpush1.msra.mxu0 0.0
    %1887 = vmatprep.subr.mxu0 0.0
    %1888 = vmatpush1.msra.mxu0 0.0
    %1889 = vmatprep.subr.mxu0 0.0
    %1890 = vmatpush1.msra.mxu0 0.0
    %1891 = vmatprep.subr.mxu0 0.0
    %1892 = vmatpush1.msra.mxu0 0.0
    %1893 = vmatprep.subr.mxu0 0.0
    %1894 = vmatpush1.msra.mxu0 0.0
    %1895 = vmatprep.subr.mxu0 0.0
    %1896 = vmatpush1.msra.mxu0 0.0
    %1897 = vmatprep.subr.mxu0 0.0
    %1898 = vmatpush1.msra.mxu0 0.0
    %1899 = vmatprep.subr.mxu0 0.0
    %1900 = vmatpush1.msra.mxu0 0.0
    %1901 = vmatprep.subr.mxu0 0.0
    %1902 = vmatpush1.msra.mxu0 0.0
    %1903 = vmatprep.subr.mxu0 0.0
    %1904 = vmatpush1.msra.mxu0 0.0
    %1905 = vmatprep.subr.mxu0 0.0
    %1906 = vmatpush1.msra.mxu0 0.0
    %1907 = vmatprep.subr.mxu0 0.0
    %1908 = vmatpush1.msra.mxu0 0.0
    %1909 = vmatprep.subr.mxu0 0.0
    %1910 = vmatpush1.msra.mxu0 0.0
    %1911 = vmatprep.subr.mxu0 0.0
    %1912 = vmatpush1.msra.mxu0 0.0
    %1913 = vmatprep.subr.mxu0 0.0
    %1914 = vmatpush1.msra.mxu0 0.0
    %1915 = vmatprep.subr.mxu0 0.0
    %1916 = vmatpush1.msra.mxu0 0.0
    %1917 = vmatprep.subr.mxu0 0.0
    %1918 = vmatpush1.msra.mxu0 0.0
    %1919 = vmatprep.subr.mxu0 0.0
    %1920 = vmatpush1.msra.mxu0 0.0
    %1921 = vmatprep.subr.mxu0 0.0
    %1922 = vmatpush1.msra.mxu0 0.0
    %1923 = vmatprep.subr.mxu0 0.0
    %1924 = vmatpush1.msra.mxu0 0.0
    %1925 = vmatprep.subr.mxu0 0.0
    %1926 = vmatpush1.msra.mxu0 0.0
    %1927 = vmatprep.subr.mxu0 0.0
    %1928 = vmatpush1.msra.mxu0 0.0
    %1929 = vmatprep.subr.mxu0 0.0
    %1930 = vmatpush1.msra.mxu0 0.0
    %1931 = vmatprep.subr.mxu0 0.0
    %1932 = vmatpush1.msra.mxu0 0.0
    %1933 = vmatprep.subr.mxu0 0.0
    %1934 = vmatpush1.msra.mxu0 0.0
    %1935 = vmatprep.mubr.f32.mxu0 0.0
    %1936 = vmatmul.mubr.f32.gmra.mrb[0].mxu0 %v1869
    %v1937 = vpop.f32.mrb[0].mxu0
    %v1938 = vadd.f32 0.0, %v1937
    %v1939 = vpop.f32.mrb[0].mxu0
    %1940 = vdwg.mxu0
    %v1942 = vsel %vm125, %v1421, 0
    %1944 = vmatprep.subr.mxu0 0.0
    %1945 = vmatpush1.msra.mxu0 %v1429
    %1946 = vmatprep.subr.mxu0 0.0
    %1947 = vmatpush1.msra.mxu0 0.0
    %1948 = vmatprep.subr.mxu0 0.0
    %1949 = vmatpush1.msra.mxu0 0.0
    %1950 = vmatprep.subr.mxu0 0.0
    %1951 = vmatpush1.msra.mxu0 0.0
    %1952 = vmatprep.subr.mxu0 0.0
    %1953 = vmatpush1.msra.mxu0 0.0
    %1954 = vmatprep.subr.mxu0 0.0
    %1955 = vmatpush1.msra.mxu0 0.0
    %1956 = vmatprep.subr.mxu0 0.0
    %1957 = vmatpush1.msra.mxu0 0.0
    %1958 = vmatprep.subr.mxu0 0.0
    %1959 = vmatpush1.msra.mxu0 0.0
    %1960 = vmatprep.subr.mxu0 0.0
    %1961 = vmatpush1.msra.mxu0 0.0
    %1962 = vmatprep.subr.mxu0 0.0
    %1963 = vmatpush1.msra.mxu0 0.0
    %1964 = vmatprep.subr.mxu0 0.0
    %1965 = vmatpush1.msra.mxu0 0.0
    %1966 = vmatprep.subr.mxu0 0.0
    %1967 = vmatpush1.msra.mxu0 0.0
    %1968 = vmatprep.subr.mxu0 0.0
    %1969 = vmatpush1.msra.mxu0 0.0
    %1970 = vmatprep.subr.mxu0 0.0
    %1971 = vmatpush1.msra.mxu0 0.0
    %1972 = vmatprep.subr.mxu0 0.0
    %1973 = vmatpush1.msra.mxu0 0.0
    %1974 = vmatprep.subr.mxu0 0.0
    %1975 = vmatpush1.msra.mxu0 0.0
    %1976 = vmatprep.subr.mxu0 0.0
    %1977 = vmatpush1.msra.mxu0 0.0
    %1978 = vmatprep.subr.mxu0 0.0
    %1979 = vmatpush1.msra.mxu0 0.0
    %1980 = vmatprep.subr.mxu0 0.0
    %1981 = vmatpush1.msra.mxu0 0.0
    %1982 = vmatprep.subr.mxu0 0.0
    %1983 = vmatpush1.msra.mxu0 0.0
    %1984 = vmatprep.subr.mxu0 0.0
    %1985 = vmatpush1.msra.mxu0 0.0
    %1986 = vmatprep.subr.mxu0 0.0
    %1987 = vmatpush1.msra.mxu0 0.0
    %1988 = vmatprep.subr.mxu0 0.0
    %1989 = vmatpush1.msra.mxu0 0.0
    %1990 = vmatprep.subr.mxu0 0.0
    %1991 = vmatpush1.msra.mxu0 0.0
    %1992 = vmatprep.subr.mxu0 0.0
    %1993 = vmatpush1.msra.mxu0 0.0
    %1994 = vmatprep.subr.mxu0 0.0
    %1995 = vmatpush1.msra.mxu0 0.0
    %1996 = vmatprep.subr.mxu0 0.0
    %1997 = vmatpush1.msra.mxu0 0.0
    %1998 = vmatprep.subr.mxu0 0.0
    %1999 = vmatpush1.msra.mxu0 0.0
    %2000 = vmatprep.subr.mxu0 0.0
    %2001 = vmatpush1.msra.mxu0 0.0
    %2002 = vmatprep.subr.mxu0 0.0
    %2003 = vmatpush1.msra.mxu0 0.0
    %2004 = vmatprep.subr.mxu0 0.0
    %2005 = vmatpush1.msra.mxu0 0.0
    %2006 = vmatprep.subr.mxu0 0.0
    %2007 = vmatpush1.msra.mxu0 0.0
    %2008 = vmatprep.mubr.f32.mxu0 0.0
    %2009 = vmatmul.mubr.f32.gmra.mrb[0].mxu0 %v1942
    %v2010 = vpop.f32.mrb[0].mxu0
    %v2011 = vadd.f32 0.0, %v2010
    %v2012 = vpop.f32.mrb[0].mxu0
    %2013 = vdwg.mxu0
    %v2014 = vld [vmem:[#allocation10] sm:$0xff]
    %v2015 = vld [vmem:[#allocation10 + $0x8] sm:$0xff]
    %v2016 = vld [vmem:[#allocation10 + $0x10] sm:$0xff]
    %v2017 = vld [vmem:[#allocation10 + $0x18] sm:$0xff]
    %v2018 = vld [vmem:[#allocation10 + $0x20] sm:$0xff]
    %v2019 = vld [vmem:[#allocation10 + $0x28] sm:$0xff]
    %v2020 = vld [vmem:[#allocation10 + $0x30] sm:$0xff]
    %v2021 = vld [vmem:[#allocation10 + $0x38] sm:$0xff]
    %v2023 = vsel %vm125, %v1500, 0
    %2025 = vmatprep.subr.mxu0 0.0
    %2026 = vmatpush1.msra.mxu0 %v2014
    %2027 = vmatprep.subr.mxu0 0.0
    %2028 = vmatpush1.msra.mxu0 0.0
    %2029 = vmatprep.subr.mxu0 0.0
    %2030 = vmatpush1.msra.mxu0 0.0
    %2031 = vmatprep.subr.mxu0 0.0
    %2032 = vmatpush1.msra.mxu0 0.0
    %2033 = vmatprep.subr.mxu0 0.0
    %2034 = vmatpush1.msra.mxu0 0.0
    %2035 = vmatprep.subr.mxu0 0.0
    %2036 = vmatpush1.msra.mxu0 0.0
    %2037 = vmatprep.subr.mxu0 0.0
    %2038 = vmatpush1.msra.mxu0 0.0
    %2039 = vmatprep.subr.mxu0 0.0
    %2040 = vmatpush1.msra.mxu0 0.0
    %2041 = vmatprep.subr.mxu0 0.0
    %2042 = vmatpush1.msra.mxu0 0.0
    %2043 = vmatprep.subr.mxu0 0.0
    %2044 = vmatpush1.msra.mxu0 0.0
    %2045 = vmatprep.subr.mxu0 0.0
    %2046 = vmatpush1.msra.mxu0 0.0
    %2047 = vmatprep.subr.mxu0 0.0
    %2048 = vmatpush1.msra.mxu0 0.0
    %2049 = vmatprep.subr.mxu0 0.0
    %2050 = vmatpush1.msra.mxu0 0.0
    %2051 = vmatprep.subr.mxu0 0.0
    %2052 = vmatpush1.msra.mxu0 0.0
    %2053 = vmatprep.subr.mxu0 0.0
    %2054 = vmatpush1.msra.mxu0 0.0
    %2055 = vmatprep.subr.mxu0 0.0
    %2056 = vmatpush1.msra.mxu0 0.0
    %2057 = vmatprep.subr.mxu0 0.0
    %2058 = vmatpush1.msra.mxu0 0.0
    %2059 = vmatprep.subr.mxu0 0.0
    %2060 = vmatpush1.msra.mxu0 0.0
    %2061 = vmatprep.subr.mxu0 0.0
    %2062 = vmatpush1.msra.mxu0 0.0
    %2063 = vmatprep.subr.mxu0 0.0
    %2064 = vmatpush1.msra.mxu0 0.0
    %2065 = vmatprep.subr.mxu0 0.0
    %2066 = vmatpush1.msra.mxu0 0.0
    %2067 = vmatprep.subr.mxu0 0.0
    %2068 = vmatpush1.msra.mxu0 0.0
    %2069 = vmatprep.subr.mxu0 0.0
    %2070 = vmatpush1.msra.mxu0 0.0
    %2071 = vmatprep.subr.mxu0 0.0
    %2072 = vmatpush1.msra.mxu0 0.0
    %2073 = vmatprep.subr.mxu0 0.0
    %2074 = vmatpush1.msra.mxu0 0.0
    %2075 = vmatprep.subr.mxu0 0.0
    %2076 = vmatpush1.msra.mxu0 0.0
    %2077 = vmatprep.subr.mxu0 0.0
    %2078 = vmatpush1.msra.mxu0 0.0
    %2079 = vmatprep.subr.mxu0 0.0
    %2080 = vmatpush1.msra.mxu0 0.0
    %2081 = vmatprep.subr.mxu0 0.0
    %2082 = vmatpush1.msra.mxu0 0.0
    %2083 = vmatprep.subr.mxu0 0.0
    %2084 = vmatpush1.msra.mxu0 0.0
    %2085 = vmatprep.subr.mxu0 0.0
    %2086 = vmatpush1.msra.mxu0 0.0
    %2087 = vmatprep.subr.mxu0 0.0
    %2088 = vmatpush1.msra.mxu0 0.0
    %2089 = vmatprep.mubr.f32.mxu0 0.0
    %2090 = vmatmul.mubr.f32.gmra.mrb[0].mxu0 %v2023
    %v2091 = vpop.f32.mrb[0].mxu0
    %v2092 = vadd.f32 0.0, %v2091
    %v2093 = vpop.f32.mrb[0].mxu0
    %2094 = vdwg.mxu0
    %v2096 = vsel %vm125, %v1573, 0
    %2098 = vmatprep.subr.mxu0 0.0
    %2099 = vmatpush1.msra.mxu0 %v2015
    %2100 = vmatprep.subr.mxu0 0.0
    %2101 = vmatpush1.msra.mxu0 0.0
    %2102 = vmatprep.subr.mxu0 0.0
    %2103 = vmatpush1.msra.mxu0 0.0
    %2104 = vmatprep.subr.mxu0 0.0
    %2105 = vmatpush1.msra.mxu0 0.0
    %2106 = vmatprep.subr.mxu0 0.0
    %2107 = vmatpush1.msra.mxu0 0.0
    %2108 = vmatprep.subr.mxu0 0.0
    %2109 = vmatpush1.msra.mxu0 0.0
    %2110 = vmatprep.subr.mxu0 0.0
    %2111 = vmatpush1.msra.mxu0 0.0
    %2112 = vmatprep.subr.mxu0 0.0
    %2113 = vmatpush1.msra.mxu0 0.0
    %2114 = vmatprep.subr.mxu0 0.0
    %2115 = vmatpush1.msra.mxu0 0.0
    %2116 = vmatprep.subr.mxu0 0.0
    %2117 = vmatpush1.msra.mxu0 0.0
    %2118 = vmatprep.subr.mxu0 0.0
    %2119 = vmatpush1.msra.mxu0 0.0
    %2120 = vmatprep.subr.mxu0 0.0
    %2121 = vmatpush1.msra.mxu0 0.0
    %2122 = vmatprep.subr.mxu0 0.0
    %2123 = vmatpush1.msra.mxu0 0.0
    %2124 = vmatprep.subr.mxu0 0.0
    %2125 = vmatpush1.msra.mxu0 0.0
    %2126 = vmatprep.subr.mxu0 0.0
    %2127 = vmatpush1.msra.mxu0 0.0
    %2128 = vmatprep.subr.mxu0 0.0
    %2129 = vmatpush1.msra.mxu0 0.0
    %2130 = vmatprep.subr.mxu0 0.0
    %2131 = vmatpush1.msra.mxu0 0.0
    %2132 = vmatprep.subr.mxu0 0.0
    %2133 = vmatpush1.msra.mxu0 0.0
    %2134 = vmatprep.subr.mxu0 0.0
    %2135 = vmatpush1.msra.mxu0 0.0
    %2136 = vmatprep.subr.mxu0 0.0
    %2137 = vmatpush1.msra.mxu0 0.0
    %2138 = vmatprep.subr.mxu0 0.0
    %2139 = vmatpush1.msra.mxu0 0.0
    %2140 = vmatprep.subr.mxu0 0.0
    %2141 = vmatpush1.msra.mxu0 0.0
    %2142 = vmatprep.subr.mxu0 0.0
    %2143 = vmatpush1.msra.mxu0 0.0
    %2144 = vmatprep.subr.mxu0 0.0
    %2145 = vmatpush1.msra.mxu0 0.0
    %2146 = vmatprep.subr.mxu0 0.0
    %2147 = vmatpush1.msra.mxu0 0.0
    %2148 = vmatprep.subr.mxu0 0.0
    %2149 = vmatpush1.msra.mxu0 0.0
    %2150 = vmatprep.subr.mxu0 0.0
    %2151 = vmatpush1.msra.mxu0 0.0
    %2152 = vmatprep.subr.mxu0 0.0
    %2153 = vmatpush1.msra.mxu0 0.0
    %2154 = vmatprep.subr.mxu0 0.0
    %2155 = vmatpush1.msra.mxu0 0.0
    %2156 = vmatprep.subr.mxu0 0.0
    %2157 = vmatpush1.msra.mxu0 0.0
    %2158 = vmatprep.subr.mxu0 0.0
    %2159 = vmatpush1.msra.mxu0 0.0
    %2160 = vmatprep.subr.mxu0 0.0
    %2161 = vmatpush1.msra.mxu0 0.0
    %2162 = vmatprep.mubr.f32.mxu0 0.0
    %2163 = vmatmul.mubr.f32.gmra.mrb[0].mxu0 %v2096
    %v2164 = vpop.f32.mrb[0].mxu0
    %v2165 = vadd.f32 0.0, %v2164
    %v2166 = vpop.f32.mrb[0].mxu0
    %2167 = vdwg.mxu0
    %v2169 = vsel %vm125, %v1646, 0
    %2171 = vmatprep.subr.mxu0 0.0
    %2172 = vmatpush1.msra.mxu0 %v2016
    %2173 = vmatprep.subr.mxu0 0.0
    %2174 = vmatpush1.msra.mxu0 0.0
    %2175 = vmatprep.subr.mxu0 0.0
    %2176 = vmatpush1.msra.mxu0 0.0
    %2177 = vmatprep.subr.mxu0 0.0
    %2178 = vmatpush1.msra.mxu0 0.0
    %2179 = vmatprep.subr.mxu0 0.0
    %2180 = vmatpush1.msra.mxu0 0.0
    %2181 = vmatprep.subr.mxu0 0.0
    %2182 = vmatpush1.msra.mxu0 0.0
    %2183 = vmatprep.subr.mxu0 0.0
    %2184 = vmatpush1.msra.mxu0 0.0
    %2185 = vmatprep.subr.mxu0 0.0
    %2186 = vmatpush1.msra.mxu0 0.0
    %2187 = vmatprep.subr.mxu0 0.0
    %2188 = vmatpush1.msra.mxu0 0.0
    %2189 = vmatprep.subr.mxu0 0.0
    %2190 = vmatpush1.msra.mxu0 0.0
    %2191 = vmatprep.subr.mxu0 0.0
    %2192 = vmatpush1.msra.mxu0 0.0
    %2193 = vmatprep.subr.mxu0 0.0
    %2194 = vmatpush1.msra.mxu0 0.0
    %2195 = vmatprep.subr.mxu0 0.0
    %2196 = vmatpush1.msra.mxu0 0.0
    %2197 = vmatprep.subr.mxu0 0.0
    %2198 = vmatpush1.msra.mxu0 0.0
    %2199 = vmatprep.subr.mxu0 0.0
    %2200 = vmatpush1.msra.mxu0 0.0
    %2201 = vmatprep.subr.mxu0 0.0
    %2202 = vmatpush1.msra.mxu0 0.0
    %2203 = vmatprep.subr.mxu0 0.0
    %2204 = vmatpush1.msra.mxu0 0.0
    %2205 = vmatprep.subr.mxu0 0.0
    %2206 = vmatpush1.msra.mxu0 0.0
    %2207 = vmatprep.subr.mxu0 0.0
    %2208 = vmatpush1.msra.mxu0 0.0
    %2209 = vmatprep.subr.mxu0 0.0
    %2210 = vmatpush1.msra.mxu0 0.0
    %2211 = vmatprep.subr.mxu0 0.0
    %2212 = vmatpush1.msra.mxu0 0.0
    %2213 = vmatprep.subr.mxu0 0.0
    %2214 = vmatpush1.msra.mxu0 0.0
    %2215 = vmatprep.subr.mxu0 0.0
    %2216 = vmatpush1.msra.mxu0 0.0
    %2217 = vmatprep.subr.mxu0 0.0
    %2218 = vmatpush1.msra.mxu0 0.0
    %2219 = vmatprep.subr.mxu0 0.0
    %2220 = vmatpush1.msra.mxu0 0.0
    %2221 = vmatprep.subr.mxu0 0.0
    %2222 = vmatpush1.msra.mxu0 0.0
    %2223 = vmatprep.subr.mxu0 0.0
    %2224 = vmatpush1.msra.mxu0 0.0
    %2225 = vmatprep.subr.mxu0 0.0
    %2226 = vmatpush1.msra.mxu0 0.0
    %2227 = vmatprep.subr.mxu0 0.0
    %2228 = vmatpush1.msra.mxu0 0.0
    %2229 = vmatprep.subr.mxu0 0.0
    %2230 = vmatpush1.msra.mxu0 0.0
    %2231 = vmatprep.subr.mxu0 0.0
    %2232 = vmatpush1.msra.mxu0 0.0
    %2233 = vmatprep.subr.mxu0 0.0
    %2234 = vmatpush1.msra.mxu0 0.0
    %2235 = vmatprep.mubr.f32.mxu0 0.0
    %2236 = vmatmul.mubr.f32.gmra.mrb[0].mxu0 %v2169
    %v2237 = vpop.f32.mrb[0].mxu0
    %v2238 = vadd.f32 0.0, %v2237
    %v2239 = vpop.f32.mrb[0].mxu0
    %2240 = vdwg.mxu0
    %v2242 = vsel %vm125, %v1719, 0
    %2244 = vmatprep.subr.mxu0 0.0
    %2245 = vmatpush1.msra.mxu0 %v2017
    %2246 = vmatprep.subr.mxu0 0.0
    %2247 = vmatpush1.msra.mxu0 0.0
    %2248 = vmatprep.subr.mxu0 0.0
    %2249 = vmatpush1.msra.mxu0 0.0
    %2250 = vmatprep.subr.mxu0 0.0
    %2251 = vmatpush1.msra.mxu0 0.0
    %2252 = vmatprep.subr.mxu0 0.0
    %2253 = vmatpush1.msra.mxu0 0.0
    %2254 = vmatprep.subr.mxu0 0.0
    %2255 = vmatpush1.msra.mxu0 0.0
    %2256 = vmatprep.subr.mxu0 0.0
    %2257 = vmatpush1.msra.mxu0 0.0
    %2258 = vmatprep.subr.mxu0 0.0
    %2259 = vmatpush1.msra.mxu0 0.0
    %2260 = vmatprep.subr.mxu0 0.0
    %2261 = vmatpush1.msra.mxu0 0.0
    %2262 = vmatprep.subr.mxu0 0.0
    %2263 = vmatpush1.msra.mxu0 0.0
    %2264 = vmatprep.subr.mxu0 0.0
    %2265 = vmatpush1.msra.mxu0 0.0
    %2266 = vmatprep.subr.mxu0 0.0
    %2267 = vmatpush1.msra.mxu0 0.0
    %2268 = vmatprep.subr.mxu0 0.0
    %2269 = vmatpush1.msra.mxu0 0.0
    %2270 = vmatprep.subr.mxu0 0.0
    %2271 = vmatpush1.msra.mxu0 0.0
    %2272 = vmatprep.subr.mxu0 0.0
    %2273 = vmatpush1.msra.mxu0 0.0
    %2274 = vmatprep.subr.mxu0 0.0
    %2275 = vmatpush1.msra.mxu0 0.0
    %2276 = vmatprep.subr.mxu0 0.0
    %2277 = vmatpush1.msra.mxu0 0.0
    %2278 = vmatprep.subr.mxu0 0.0
    %2279 = vmatpush1.msra.mxu0 0.0
    %2280 = vmatprep.subr.mxu0 0.0
    %2281 = vmatpush1.msra.mxu0 0.0
    %2282 = vmatprep.subr.mxu0 0.0
    %2283 = vmatpush1.msra.mxu0 0.0
    %2284 = vmatprep.subr.mxu0 0.0
    %2285 = vmatpush1.msra.mxu0 0.0
    %2286 = vmatprep.subr.mxu0 0.0
    %2287 = vmatpush1.msra.mxu0 0.0
    %2288 = vmatprep.subr.mxu0 0.0
    %2289 = vmatpush1.msra.mxu0 0.0
    %2290 = vmatprep.subr.mxu0 0.0
    %2291 = vmatpush1.msra.mxu0 0.0
    %2292 = vmatprep.subr.mxu0 0.0
    %2293 = vmatpush1.msra.mxu0 0.0
    %2294 = vmatprep.subr.mxu0 0.0
    %2295 = vmatpush1.msra.mxu0 0.0
    %2296 = vmatprep.subr.mxu0 0.0
    %2297 = vmatpush1.msra.mxu0 0.0
    %2298 = vmatprep.subr.mxu0 0.0
    %2299 = vmatpush1.msra.mxu0 0.0
    %2300 = vmatprep.subr.mxu0 0.0
    %2301 = vmatpush1.msra.mxu0 0.0
    %2302 = vmatprep.subr.mxu0 0.0
    %2303 = vmatpush1.msra.mxu0 0.0
    %2304 = vmatprep.subr.mxu0 0.0
    %2305 = vmatpush1.msra.mxu0 0.0
    %2306 = vmatprep.subr.mxu0 0.0
    %2307 = vmatpush1.msra.mxu0 0.0
    %2308 = vmatprep.mubr.f32.mxu0 0.0
    %2309 = vmatmul.mubr.f32.gmra.mrb[0].mxu0 %v2242
    %v2310 = vpop.f32.mrb[0].mxu0
    %v2311 = vadd.f32 0.0, %v2310
    %v2312 = vpop.f32.mrb[0].mxu0
    %2313 = vdwg.mxu0
    %v2315 = vsel %vm125, %v1792, 0
    %2317 = vmatprep.subr.mxu0 0.0
    %2318 = vmatpush1.msra.mxu0 %v2018
    %2319 = vmatprep.subr.mxu0 0.0
    %2320 = vmatpush1.msra.mxu0 0.0
    %2321 = vmatprep.subr.mxu0 0.0
    %2322 = vmatpush1.msra.mxu0 0.0
    %2323 = vmatprep.subr.mxu0 0.0
    %2324 = vmatpush1.msra.mxu0 0.0
    %2325 = vmatprep.subr.mxu0 0.0
    %2326 = vmatpush1.msra.mxu0 0.0
    %2327 = vmatprep.subr.mxu0 0.0
    %2328 = vmatpush1.msra.mxu0 0.0
    %2329 = vmatprep.subr.mxu0 0.0
    %2330 = vmatpush1.msra.mxu0 0.0
    %2331 = vmatprep.subr.mxu0 0.0
    %2332 = vmatpush1.msra.mxu0 0.0
    %2333 = vmatprep.subr.mxu0 0.0
    %2334 = vmatpush1.msra.mxu0 0.0
    %2335 = vmatprep.subr.mxu0 0.0
    %2336 = vmatpush1.msra.mxu0 0.0
    %2337 = vmatprep.subr.mxu0 0.0
    %2338 = vmatpush1.msra.mxu0 0.0
    %2339 = vmatprep.subr.mxu0 0.0
    %2340 = vmatpush1.msra.mxu0 0.0
    %2341 = vmatprep.subr.mxu0 0.0
    %2342 = vmatpush1.msra.mxu0 0.0
    %2343 = vmatprep.subr.mxu0 0.0
    %2344 = vmatpush1.msra.mxu0 0.0
    %2345 = vmatprep.subr.mxu0 0.0
    %2346 = vmatpush1.msra.mxu0 0.0
    %2347 = vmatprep.subr.mxu0 0.0
    %2348 = vmatpush1.msra.mxu0 0.0
    %2349 = vmatprep.subr.mxu0 0.0
    %2350 = vmatpush1.msra.mxu0 0.0
    %2351 = vmatprep.subr.mxu0 0.0
    %2352 = vmatpush1.msra.mxu0 0.0
    %2353 = vmatprep.subr.mxu0 0.0
    %2354 = vmatpush1.msra.mxu0 0.0
    %2355 = vmatprep.subr.mxu0 0.0
    %2356 = vmatpush1.msra.mxu0 0.0
    %2357 = vmatprep.subr.mxu0 0.0
    %2358 = vmatpush1.msra.mxu0 0.0
    %2359 = vmatprep.subr.mxu0 0.0
    %2360 = vmatpush1.msra.mxu0 0.0
    %2361 = vmatprep.subr.mxu0 0.0
    %2362 = vmatpush1.msra.mxu0 0.0
    %2363 = vmatprep.subr.mxu0 0.0
    %2364 = vmatpush1.msra.mxu0 0.0
    %2365 = vmatprep.subr.mxu0 0.0
    %2366 = vmatpush1.msra.mxu0 0.0
    %2367 = vmatprep.subr.mxu0 0.0
    %2368 = vmatpush1.msra.mxu0 0.0
    %2369 = vmatprep.subr.mxu0 0.0
    %2370 = vmatpush1.msra.mxu0 0.0
    %2371 = vmatprep.subr.mxu0 0.0
    %2372 = vmatpush1.msra.mxu0 0.0
    %2373 = vmatprep.subr.mxu0 0.0
    %2374 = vmatpush1.msra.mxu0 0.0
    %2375 = vmatprep.subr.mxu0 0.0
    %2376 = vmatpush1.msra.mxu0 0.0
    %2377 = vmatprep.subr.mxu0 0.0
    %2378 = vmatpush1.msra.mxu0 0.0
    %2379 = vmatprep.subr.mxu0 0.0
    %2380 = vmatpush1.msra.mxu0 0.0
    %2381 = vmatprep.mubr.f32.mxu0 0.0
    %2382 = vmatmul.mubr.f32.gmra.mrb[0].mxu0 %v2315
    %v2383 = vpop.f32.mrb[0].mxu0
    %v2384 = vadd.f32 0.0, %v2383
    %v2385 = vpop.f32.mrb[0].mxu0
    %2386 = vdwg.mxu0
    %v2388 = vsel %vm125, %v1865, 0
    %2390 = vmatprep.subr.mxu0 0.0
    %2391 = vmatpush1.msra.mxu0 %v2019
    %2392 = vmatprep.subr.mxu0 0.0
    %2393 = vmatpush1.msra.mxu0 0.0
    %2394 = vmatprep.subr.mxu0 0.0
    %2395 = vmatpush1.msra.mxu0 0.0
    %2396 = vmatprep.subr.mxu0 0.0
    %2397 = vmatpush1.msra.mxu0 0.0
    %2398 = vmatprep.subr.mxu0 0.0
    %2399 = vmatpush1.msra.mxu0 0.0
    %2400 = vmatprep.subr.mxu0 0.0
    %2401 = vmatpush1.msra.mxu0 0.0
    %2402 = vmatprep.subr.mxu0 0.0
    %2403 = vmatpush1.msra.mxu0 0.0
    %2404 = vmatprep.subr.mxu0 0.0
    %2405 = vmatpush1.msra.mxu0 0.0
    %2406 = vmatprep.subr.mxu0 0.0
    %2407 = vmatpush1.msra.mxu0 0.0
    %2408 = vmatprep.subr.mxu0 0.0
    %2409 = vmatpush1.msra.mxu0 0.0
    %2410 = vmatprep.subr.mxu0 0.0
    %2411 = vmatpush1.msra.mxu0 0.0
    %2412 = vmatprep.subr.mxu0 0.0
    %2413 = vmatpush1.msra.mxu0 0.0
    %2414 = vmatprep.subr.mxu0 0.0
    %2415 = vmatpush1.msra.mxu0 0.0
    %2416 = vmatprep.subr.mxu0 0.0
    %2417 = vmatpush1.msra.mxu0 0.0
    %2418 = vmatprep.subr.mxu0 0.0
    %2419 = vmatpush1.msra.mxu0 0.0
    %2420 = vmatprep.subr.mxu0 0.0
    %2421 = vmatpush1.msra.mxu0 0.0
    %2422 = vmatprep.subr.mxu0 0.0
    %2423 = vmatpush1.msra.mxu0 0.0
    %2424 = vmatprep.subr.mxu0 0.0
    %2425 = vmatpush1.msra.mxu0 0.0
    %2426 = vmatprep.subr.mxu0 0.0
    %2427 = vmatpush1.msra.mxu0 0.0
    %2428 = vmatprep.subr.mxu0 0.0
    %2429 = vmatpush1.msra.mxu0 0.0
    %2430 = vmatprep.subr.mxu0 0.0
    %2431 = vmatpush1.msra.mxu0 0.0
    %2432 = vmatprep.subr.mxu0 0.0
    %2433 = vmatpush1.msra.mxu0 0.0
    %2434 = vmatprep.subr.mxu0 0.0
    %2435 = vmatpush1.msra.mxu0 0.0
    %2436 = vmatprep.subr.mxu0 0.0
    %2437 = vmatpush1.msra.mxu0 0.0
    %2438 = vmatprep.subr.mxu0 0.0
    %2439 = vmatpush1.msra.mxu0 0.0
    %2440 = vmatprep.subr.mxu0 0.0
    %2441 = vmatpush1.msra.mxu0 0.0
    %2442 = vmatprep.subr.mxu0 0.0
    %2443 = vmatpush1.msra.mxu0 0.0
    %2444 = vmatprep.subr.mxu0 0.0
    %2445 = vmatpush1.msra.mxu0 0.0
    %2446 = vmatprep.subr.mxu0 0.0
    %2447 = vmatpush1.msra.mxu0 0.0
    %2448 = vmatprep.subr.mxu0 0.0
    %2449 = vmatpush1.msra.mxu0 0.0
    %2450 = vmatprep.subr.mxu0 0.0
    %2451 = vmatpush1.msra.mxu0 0.0
    %2452 = vmatprep.subr.mxu0 0.0
    %2453 = vmatpush1.msra.mxu0 0.0
    %2454 = vmatprep.mubr.f32.mxu0 0.0
    %2455 = vmatmul.mubr.f32.gmra.mrb[0].mxu0 %v2388
    %v2456 = vpop.f32.mrb[0].mxu0
    %v2457 = vadd.f32 0.0, %v2456
    %v2458 = vpop.f32.mrb[0].mxu0
    %2459 = vdwg.mxu0
    %v2461 = vsel %vm125, %v1938, 0
    %2463 = vmatprep.subr.mxu0 0.0
    %2464 = vmatpush1.msra.mxu0 %v2020
    %2465 = vmatprep.subr.mxu0 0.0
    %2466 = vmatpush1.msra.mxu0 0.0
    %2467 = vmatprep.subr.mxu0 0.0
    %2468 = vmatpush1.msra.mxu0 0.0
    %2469 = vmatprep.subr.mxu0 0.0
    %2470 = vmatpush1.msra.mxu0 0.0
    %2471 = vmatprep.subr.mxu0 0.0
    %2472 = vmatpush1.msra.mxu0 0.0
    %2473 = vmatprep.subr.mxu0 0.0
    %2474 = vmatpush1.msra.mxu0 0.0
    %2475 = vmatprep.subr.mxu0 0.0
    %2476 = vmatpush1.msra.mxu0 0.0
    %2477 = vmatprep.subr.mxu0 0.0
    %2478 = vmatpush1.msra.mxu0 0.0
    %2479 = vmatprep.subr.mxu0 0.0
    %2480 = vmatpush1.msra.mxu0 0.0
    %2481 = vmatprep.subr.mxu0 0.0
    %2482 = vmatpush1.msra.mxu0 0.0
    %2483 = vmatprep.subr.mxu0 0.0
    %2484 = vmatpush1.msra.mxu0 0.0
    %2485 = vmatprep.subr.mxu0 0.0
    %2486 = vmatpush1.msra.mxu0 0.0
    %2487 = vmatprep.subr.mxu0 0.0
    %2488 = vmatpush1.msra.mxu0 0.0
    %2489 = vmatprep.subr.mxu0 0.0
    %2490 = vmatpush1.msra.mxu0 0.0
    %2491 = vmatprep.subr.mxu0 0.0
    %2492 = vmatpush1.msra.mxu0 0.0
    %2493 = vmatprep.subr.mxu0 0.0
    %2494 = vmatpush1.msra.mxu0 0.0
    %2495 = vmatprep.subr.mxu0 0.0
    %2496 = vmatpush1.msra.mxu0 0.0
    %2497 = vmatprep.subr.mxu0 0.0
    %2498 = vmatpush1.msra.mxu0 0.0
    %2499 = vmatprep.subr.mxu0 0.0
    %2500 = vmatpush1.msra.mxu0 0.0
    %2501 = vmatprep.subr.mxu0 0.0
    %2502 = vmatpush1.msra.mxu0 0.0
    %2503 = vmatprep.subr.mxu0 0.0
    %2504 = vmatpush1.msra.mxu0 0.0
    %2505 = vmatprep.subr.mxu0 0.0
    %2506 = vmatpush1.msra.mxu0 0.0
    %2507 = vmatprep.subr.mxu0 0.0
    %2508 = vmatpush1.msra.mxu0 0.0
    %2509 = vmatprep.subr.mxu0 0.0
    %2510 = vmatpush1.msra.mxu0 0.0
    %2511 = vmatprep.subr.mxu0 0.0
    %2512 = vmatpush1.msra.mxu0 0.0
    %2513 = vmatprep.subr.mxu0 0.0
    %2514 = vmatpush1.msra.mxu0 0.0
    %2515 = vmatprep.subr.mxu0 0.0
    %2516 = vmatpush1.msra.mxu0 0.0
    %2517 = vmatprep.subr.mxu0 0.0
    %2518 = vmatpush1.msra.mxu0 0.0
    %2519 = vmatprep.subr.mxu0 0.0
    %2520 = vmatpush1.msra.mxu0 0.0
    %2521 = vmatprep.subr.mxu0 0.0
    %2522 = vmatpush1.msra.mxu0 0.0
    %2523 = vmatprep.subr.mxu0 0.0
    %2524 = vmatpush1.msra.mxu0 0.0
    %2525 = vmatprep.subr.mxu0 0.0
    %2526 = vmatpush1.msra.mxu0 0.0
    %2527 = vmatprep.mubr.f32.mxu0 0.0
    %2528 = vmatmul.mubr.f32.gmra.mrb[0].mxu0 %v2461
    %v2529 = vpop.f32.mrb[0].mxu0
    %v2530 = vadd.f32 0.0, %v2529
    %v2531 = vpop.f32.mrb[0].mxu0
    %2532 = vdwg.mxu0
    %v2534 = vsel %vm125, %v2011, 0
    %2536 = vmatprep.subr.mxu0 0.0
    %2537 = vmatpush1.msra.mxu0 %v2021
    %2538 = vmatprep.subr.mxu0 0.0
    %2539 = vmatpush1.msra.mxu0 0.0
    %2540 = vmatprep.subr.mxu0 0.0
    %2541 = vmatpush1.msra.mxu0 0.0
    %2542 = vmatprep.subr.mxu0 0.0
    %2543 = vmatpush1.msra.mxu0 0.0
    %2544 = vmatprep.subr.mxu0 0.0
    %2545 = vmatpush1.msra.mxu0 0.0
    %2546 = vmatprep.subr.mxu0 0.0
    %2547 = vmatpush1.msra.mxu0 0.0
    %2548 = vmatprep.subr.mxu0 0.0
    %2549 = vmatpush1.msra.mxu0 0.0
    %2550 = vmatprep.subr.mxu0 0.0
    %2551 = vmatpush1.msra.mxu0 0.0
    %2552 = vmatprep.subr.mxu0 0.0
    %2553 = vmatpush1.msra.mxu0 0.0
    %2554 = vmatprep.subr.mxu0 0.0
    %2555 = vmatpush1.msra.mxu0 0.0
    %2556 = vmatprep.subr.mxu0 0.0
    %2557 = vmatpush1.msra.mxu0 0.0
    %2558 = vmatprep.subr.mxu0 0.0
    %2559 = vmatpush1.msra.mxu0 0.0
    %2560 = vmatprep.subr.mxu0 0.0
    %2561 = vmatpush1.msra.mxu0 0.0
    %2562 = vmatprep.subr.mxu0 0.0
    %2563 = vmatpush1.msra.mxu0 0.0
    %2564 = vmatprep.subr.mxu0 0.0
    %2565 = vmatpush1.msra.mxu0 0.0
    %2566 = vmatprep.subr.mxu0 0.0
    %2567 = vmatpush1.msra.mxu0 0.0
    %2568 = vmatprep.subr.mxu0 0.0
    %2569 = vmatpush1.msra.mxu0 0.0
    %2570 = vmatprep.subr.mxu0 0.0
    %2571 = vmatpush1.msra.mxu0 0.0
    %2572 = vmatprep.subr.mxu0 0.0
    %2573 = vmatpush1.msra.mxu0 0.0
    %2574 = vmatprep.subr.mxu0 0.0
    %2575 = vmatpush1.msra.mxu0 0.0
    %2576 = vmatprep.subr.mxu0 0.0
    %2577 = vmatpush1.msra.mxu0 0.0
    %2578 = vmatprep.subr.mxu0 0.0
    %2579 = vmatpush1.msra.mxu0 0.0
    %2580 = vmatprep.subr.mxu0 0.0
    %2581 = vmatpush1.msra.mxu0 0.0
    %2582 = vmatprep.subr.mxu0 0.0
    %2583 = vmatpush1.msra.mxu0 0.0
    %2584 = vmatprep.subr.mxu0 0.0
    %2585 = vmatpush1.msra.mxu0 0.0
    %2586 = vmatprep.subr.mxu0 0.0
    %2587 = vmatpush1.msra.mxu0 0.0
    %2588 = vmatprep.subr.mxu0 0.0
    %2589 = vmatpush1.msra.mxu0 0.0
    %2590 = vmatprep.subr.mxu0 0.0
    %2591 = vmatpush1.msra.mxu0 0.0
    %2592 = vmatprep.subr.mxu0 0.0
    %2593 = vmatpush1.msra.mxu0 0.0
    %2594 = vmatprep.subr.mxu0 0.0
    %2595 = vmatpush1.msra.mxu0 0.0
    %2596 = vmatprep.subr.mxu0 0.0
    %2597 = vmatpush1.msra.mxu0 0.0
    %2598 = vmatprep.subr.mxu0 0.0
    %2599 = vmatpush1.msra.mxu0 0.0
    %2600 = vmatprep.mubr.f32.mxu0 0.0
    %2601 = vmatmul.mubr.f32.gmra.mrb[0].mxu0 %v2534
    %v2602 = vpop.f32.mrb[0].mxu0
    %v2603 = vadd.f32 0.0, %v2602
    %v2604 = vpop.f32.mrb[0].mxu0
    %2605 = vdwg.mxu0
    %v2606 = vld [vmem:[%s6] sm:$0x1]
    %vm2607 = vcmask 261120
    %v2608 = vsel %vm2607, %v2092, 0.0
    %v2609 = vsel %vm2607, %v2165, 0.0
    %v2610 = vadd.f32 %v2608, %v2609
    %v2611 = vsel %vm2607, %v2238, 0.0
    %v2612 = vadd.f32 %v2610, %v2611
    %v2613 = vsel %vm2607, %v2311, 0.0
    %v2614 = vadd.f32 %v2612, %v2613
    %v2616 = vlaneseq
    %v2617 = vshrl.u32 %v2616, 7
    %v2618 = vsub.s32 0, %v2617
    %v2619 = vrot.slane %v2606, %v2618
    %v2621 = vadd.f32 %v2614, %v2619
    %2622 = vst.msk [vmem:[#allocation13] sm:$0xff] %vm2607, %v2621
    %v2623 = vsel %vm2607, %v2384, 0.0
    %v2624 = vsel %vm2607, %v2457, 0.0
    %v2625 = vadd.f32 %v2623, %v2624
    %v2626 = vsel %vm2607, %v2530, 0.0
    %v2627 = vadd.f32 %v2625, %v2626
    %v2628 = vsel %vm2607, %v2603, 0.0
    %v2629 = vadd.f32 %v2627, %v2628
    %v2630 = vadd.f32 %v2629, %v2619
    %s2631 = scalar_lea.vmem [#allocation13], 8
    %2632 = vst.msk [vmem:[%s2631] sm:$0xff] %vm2607, %v2630
    // Predicated region
    $region54: #{tpu_custom_call.1} parent=1 // pred_check
      _
    $region55: #{tpu_custom_call.1} parent=1 // pred_check_branch
      %2634 = sbr.rel (0) target = $region57
    $region56: #{tpu_custom_call.1} parent=1 // pred_region
      %s2636 = ssub.s32 256, 256
      %2637 = vsyncadd [#allocation4], %s2636
      %s2638 = sshll.u32 [#allocation13], 4
      %s2639 = int_to_ptr.vmem [resolvable:$true] %s2638
      %2644 = dma.vmem_to_hbm [thread:$0]  %s2639, 256, %s7, [#allocation4], 128, 128, 8
    $region57: #{tpu_custom_call.1} parent=1 // pred_fallthru
      _
    // Predicated region
    $region58: #{tpu_custom_call.1} parent=1 // pred_check
      _
    $region59: #{tpu_custom_call.1} parent=1 // pred_check_branch
      %2646 = sbr.rel (0) target = $region61
    $region60: #{tpu_custom_call.1} parent=1 // pred_region
      %2647 = dma.done [#allocation4], 256
    $region61: #{tpu_custom_call.1} parent=1 // pred_fallthru
      _
    %2648 = vsyncpa [#allocation3], 1
    %2649 = vsyncpa [#allocation6], 1
    %2650 = vsyncpa [#allocation9], 1
    %2651 = vsyncpa [#allocation12], 1
    %2652 = vsyncpa [#allocation4], 1

</llo_original>
